<compile_context>
chip_gen: v5e
topology: v5e:2x2
jax: 0.10.0
libtpu: 0.0.40
codegen_flags: <defaults>
</compile_context>

<pallas_src>
import functools

import jax
import jax.numpy as jnp
from jax.experimental import pallas as pl
from jax.experimental.pallas import tpu as pltpu


# ----------------------------- fused HeadNode kernel ------------------------

def _head_node_kernel(*args, W, P, num_inputs):
    """Fused HeadNode forward on one batch element.

    Inputs are (1, M, Cin) blocks with M = H*W.  If num_inputs == 2 the kernel
    first computes (x0 + x1) * 0.5 (the IDAUp skip merge).

    Weight refs (all 2-D):
      w_dw1 (9, Cin),  s1/b1 (1, Cin)        : b1 depthwise 3x3 + BN
      w_pw1 (Cin, oi), s2/b2 (1, oi)         : b2 first 1x1 + BN (+ReLU)
      w_dw2 (9, oi),   s3/b3 (1, oi)         : b2 depthwise 3x3 + BN
      wf1 (Cin, 2oi), wf2 (oi, 2oi), sf/bf   : final 1x1s of both branches with
                                               channel_shuffle(G=2) pre-folded
                                               into interleaved columns.
    Scratch: pad1 (M+2P, Cin), pad2 (M+2P, oi) zero-halo buffers for the dw conv.
    """
    x_refs = args[:num_inputs]
    (w_dw1_ref, s1_ref, b1_ref, w_pw1_ref, s2_ref, b2_ref,
     w_dw2_ref, s3_ref, b3_ref, wf1_ref, wf2_ref, sf_ref, bf_ref,
     o_ref, pad1_ref, pad2_ref) = args[num_inputs:]

    x = x_refs[0][0].astype(jnp.float32)                      # (M, Cin)
    if num_inputs == 2:
        x = (x + x_refs[1][0].astype(jnp.float32)) * 0.5      # fused skip-average

    def dw3x3_bn(v, pad_ref, w_ref, s_ref, b_ref):
        """Depthwise 3x3 (stride 1, pad 1) + folded BN on a flattened (M, C) map."""
        Mv, C = v.shape
        # Zero-halo scratch: rows [0, P) and [P+Mv, Mv+2P) stay zero, so any tap
        # that walks off the top/bottom of the image reads zeros.
        pad_ref[...] = jnp.zeros_like(pad_ref)
        pad_ref[pl.ds(P, Mv), :] = v                           # aligned store (P % 8 == 0)
        # Column index of every output position, for masking the left/right edge
        # taps (which would otherwise wrap into the neighbouring row).
        col = jax.lax.broadcasted_iota(jnp.int32, (Mv, C), 0) % W
        acc = jnp.zeros((Mv, C), jnp.float32)
        for dy in (-1, 0, 1):
            for dx in (-1, 0, 1):
                k = (dy + 1) * 3 + (dx + 1)
                tap = w_ref[pl.ds(k, 1), :].astype(jnp.float32)           # (1, C)
                sh = pad_ref[pl.ds(P + dy * W + dx, Mv), :]               # (Mv, C)
                if dx == 1:
                    sh = jnp.where(col < W - 1, sh, 0.0)
                elif dx == -1:
                    sh = jnp.where(col > 0, sh, 0.0)
                acc = acc + sh * tap
        return acc * s_ref[...].astype(jnp.float32) + b_ref[...].astype(jnp.float32)

    # ---- branch b1: dw3x3 -> BN  (its final 1x1 + BN + ReLU is fused below) ----
    t1 = dw3x3_bn(x, pad1_ref, w_dw1_ref, s1_ref, b1_ref)      # (M, Cin)

    # ---- branch b2: 1x1 -> BN -> ReLU -> dw3x3 -> BN ---------------------------
    t2 = jnp.dot(x, w_pw1_ref[...].astype(jnp.float32),
                 preferred_element_type=jnp.float32)           # (M, oi)
    t2 = jnp.maximum(t2 * s2_ref[...] + b2_ref[...], 0.0)
    t2 = dw3x3_bn(t2, pad2_ref, w_dw2_ref, s3_ref, b3_ref)     # (M, oi)

    # ---- final 1x1 + BN + ReLU of both branches --------------------------------
    # concat + channel_shuffle(G=2) are pre-folded into the interleaved columns
    # of wf1/wf2 and of sf/bf, so this single fused matmul+BN+ReLU directly
    # produces the shuffled (M, 2*oi) output.
    y = (jnp.dot(t1, wf1_ref[...], preferred_element_type=jnp.float32)
         + jnp.dot(t2, wf2_ref[...], preferred_element_type=jnp.float32))
    y = jnp.maximum(y * sf_ref[...] + bf_ref[...], 0.0)
    o_ref[0] = y.astype(o_ref.dtype)


_WEIGHT_NAMES = ("w_dw1", "s1", "b1", "w_pw1", "s2", "b2",
                 "w_dw2", "s3", "b3", "wf1", "wf2", "sf", "bf")


def head_node(x, params, x2=None):
    """Fused HeadNode forward.

    x : (N, H, W, Cin).  If x2 is given (same shape), the HeadNode input is
    (x + x2) / 2 (the IDAUp node merge), computed inside the kernel.
    Returns (N, H, W, oup) with channel_shuffle(G=2) already applied.
    """
    N, H, W, Cin = x.shape
    oi = params["w_pw1"].shape[1]
    oup = params["wf1"].shape[1]
    M = H * W
    # Halo offset: >= W + 1 and a multiple of 8 so the scratch store is aligned.
    P = ((W + 1 + 7) // 8) * 8

    inputs = [x.reshape(N, M, Cin)]
    if x2 is not None:
        inputs.append(x2.reshape(N, M, Cin))
    num_inputs = len(inputs)
    weights = [params[k] for k in _WEIGHT_NAMES]

    in_specs = ([pl.BlockSpec((1, M, Cin), lambda n: (n, 0, 0))] * num_inputs +
                [pl.BlockSpec(w.shape, lambda n: (0, 0)) for w in weights])

    out = pl.pallas_call(
        functools.partial(_head_node_kernel, W=W, P=P, num_inputs=num_inputs),
        out_shape=jax.ShapeDtypeStruct((N, M, oup), x.dtype),
        grid=(N,),
        in_specs=in_specs,
        out_specs=pl.BlockSpec((1, M, oup), lambda n: (n, 0, 0)),
        scratch_shapes=[pltpu.VMEM((M + 2 * P, Cin), jnp.float32),
                        pltpu.VMEM((M + 2 * P, oi), jnp.float32)],
        compiler_params=pltpu.CompilerParams(
            dimension_semantics=("parallel",)),
    )(*inputs, *weights)
    return out.reshape(N, H, W, oup)


# ------------------------------- glue (JAX) --------------------------------

def upsample_nearest(x, f):
    # nn.Upsample(scale_factor=f, mode='nearest') for integer f, NHWC.
    if f == 1:
        return x
    x = jnp.repeat(x, f, axis=1)
    x = jnp.repeat(x, f, axis=2)
    return x


# ------------------------- deterministic parameters ------------------------

def make_bn(key, c):
    k1, k2, k3, k4 = jax.random.split(key, 4)
    gamma = 1.0 + 0.1 * jax.random.normal(k1, (c,), jnp.float32)
    beta = 0.1 * jax.random.normal(k2, (c,), jnp.float32)
    mean = 0.1 * jax.random.normal(k3, (c,), jnp.float32)
    var = 1.0 + 0.1 * jnp.abs(jax.random.normal(k4, (c,), jnp.float32))
    s = gamma / jnp.sqrt(var + 1e-5)
    b = beta - mean * s
    return s, b


def make_headnode_params(key, inp, oup):
    oi = oup // 2
    ks = jax.random.split(key, 10)
    b1_dw_w = 0.1 * jax.random.normal(ks[0], (3, 3, inp), jnp.float32)
    b1_bn1_s, b1_bn1_b = make_bn(ks[1], inp)
    b1_pw_w = 0.1 * jax.random.normal(ks[2], (inp, oi), jnp.float32)
    b1_bn2_s, b1_bn2_b = make_bn(ks[3], oi)
    b2_pw1_w = 0.1 * jax.random.normal(ks[4], (inp, oi), jnp.float32)
    b2_bn1_s, b2_bn1_b = make_bn(ks[5], oi)
    b2_dw_w = 0.1 * jax.random.normal(ks[6], (3, 3, oi), jnp.float32)
    b2_bn2_s, b2_bn2_b = make_bn(ks[7], oi)
    b2_pw2_w = 0.1 * jax.random.normal(ks[8], (oi, oi), jnp.float32)
    b2_bn3_s, b2_bn3_b = make_bn(ks[9], oi)

    # --- fold into the fused-kernel layout ---------------------------------
    # channel_shuffle(G=2) == interleave b1 (even) / b2 (odd) output channels;
    # fold it into the columns of the final 1x1 weights + BN (zero runtime cost).
    oc = 2 * oi
    wf1 = jnp.zeros((inp, oc), jnp.float32).at[:, 0::2].set(b1_pw_w)
    wf2 = jnp.zeros((oi, oc), jnp.float32).at[:, 1::2].set(b2_pw2_w)
    sf = jnp.zeros((oc,), jnp.float32).at[0::2].set(b1_bn2_s).at[1::2].set(b2_bn3_s)
    bf = jnp.zeros((oc,), jnp.float32).at[0::2].set(b1_bn2_b).at[1::2].set(b2_bn3_b)
    return {
        "w_dw1": b1_dw_w.reshape(9, inp),
        "s1": b1_bn1_s.reshape(1, inp), "b1": b1_bn1_b.reshape(1, inp),
        "w_pw1": b2_pw1_w,
        "s2": b2_bn1_s.reshape(1, oi), "b2": b2_bn1_b.reshape(1, oi),
        "w_dw2": b2_dw_w.reshape(9, oi),
        "s3": b2_bn2_s.reshape(1, oi), "b3": b2_bn2_b.reshape(1, oi),
        "wf1": wf1, "wf2": wf2,
        "sf": sf.reshape(1, oc), "bf": bf.reshape(1, oc),
    }


def make_ida_up_params(key, o, channels):
    params = {}
    keys = jax.random.split(key, 2 * len(channels))
    for i, c in enumerate(channels):
        if c != o:                       # c == o  -> proj_i = Identity
            params["proj_%d" % i] = make_headnode_params(keys[2 * i], c, o)
        if i > 0:
            params["node_%d" % i] = make_headnode_params(keys[2 * i + 1], o, o)
    return params


# ------------------------------ IDAUp forward ------------------------------

def ida_up_forward(params, layers, startp, endp, o, channels, up_f):
    layers = list(layers)

    def proj_up(x, j):
        if channels[j] != o:
            x = head_node(x, params["proj_%d" % j])
        return upsample_nearest(x, int(up_f[j]))

    layers[startp] = proj_up(layers[startp], 0)
    for i in range(startp + 1, endp):
        j = i - startp
        layers[i] = proj_up(layers[i], j)
        # node((layers[i] + layers[i-1]) / 2): the average is fused into the
        # node HeadNode kernel (computed on load), no extra HBM pass.
        layers[i] = head_node(layers[i], params["node_%d" % j], x2=layers[i - 1])
    return layers


# ----------------------------------- main -----------------------------------

if __name__ == "__main__":
    key = jax.random.PRNGKey(0)
    k_in0, k_in1, k_par = jax.random.split(key, 3)

    # IDAUp(batch_norm, deform_conv, o=8, channels=[8, 16], up_f=[1, 2])
    o = 8
    channels = [8, 16]
    up_f = [1, 2]

    # Reference (NCHW) inputs: layers[0]=(2,8,16,16), layers[1]=(2,16,8,8)
    x0_nchw = jax.random.normal(k_in0, (2, channels[0], 16, 16), jnp.float32)
    x1_nchw = jax.random.normal(k_in1, (2, channels[1], 8, 8), jnp.float32)

    # NCHW -> NHWC for the kernels
    layers = [jnp.transpose(x0_nchw, (0, 2, 3, 1)),
              jnp.transpose(x1_nchw, (0, 2, 3, 1))]

    params = make_ida_up_params(k_par, o, channels)

    out_layers = ida_up_forward(params, layers, startp=0, endp=2,
                                o=o, channels=channels, up_f=up_f)

    for y in out_layers:
        jax.block_until_ready(y)

    assert out_layers[0].shape == (2, 16, 16, o)
    assert out_layers[1].shape == (2, 16, 16, o)
    print("KERNEL_OK")
</pallas_src>

<mosaic_0001>
module attributes {stable_mosaic.version = 11 : i64} {
  func.func @_head_node_kernel(%arg0: i32, %arg1: memref<1x64x16xf32, #tpu.memory_space<vmem>>, %arg2: memref<9x16xf32, #tpu.memory_space<vmem>>, %arg3: memref<1x16xf32, #tpu.memory_space<vmem>>, %arg4: memref<1x16xf32, #tpu.memory_space<vmem>>, %arg5: memref<16x4xf32, #tpu.memory_space<vmem>>, %arg6: memref<1x4xf32, #tpu.memory_space<vmem>>, %arg7: memref<1x4xf32, #tpu.memory_space<vmem>>, %arg8: memref<9x4xf32, #tpu.memory_space<vmem>>, %arg9: memref<1x4xf32, #tpu.memory_space<vmem>>, %arg10: memref<1x4xf32, #tpu.memory_space<vmem>>, %arg11: memref<16x8xf32, #tpu.memory_space<vmem>>, %arg12: memref<4x8xf32, #tpu.memory_space<vmem>>, %arg13: memref<1x8xf32, #tpu.memory_space<vmem>>, %arg14: memref<1x8xf32, #tpu.memory_space<vmem>>, %arg15: memref<1x64x8xf32, #tpu.memory_space<vmem>>, %arg16: memref<96x16xf32, #tpu.memory_space<vmem>>, %arg17: memref<96x4xf32, #tpu.memory_space<vmem>>) attributes {dimension_semantics = [#tpu.dimension_semantics<parallel>], iteration_bounds = array<i64: 2>, scalar_prefetch = 0 : i64, scratch_operands = 2 : i64, tpu.core_type = #tpu.core_type<tc>, window_params = [{transform_indices = @transform_0, window_bounds = array<i64: 1, 64, 16>}, {pipeline_mode = #tpu.pipeline_mode<synchronous>, transform_indices = @transform_1, window_bounds = array<i64: 9, 16>}, {pipeline_mode = #tpu.pipeline_mode<synchronous>, transform_indices = @transform_2, window_bounds = array<i64: 1, 16>}, {pipeline_mode = #tpu.pipeline_mode<synchronous>, transform_indices = @transform_3, window_bounds = array<i64: 1, 16>}, {pipeline_mode = #tpu.pipeline_mode<synchronous>, transform_indices = @transform_4, window_bounds = array<i64: 16, 4>}, {pipeline_mode = #tpu.pipeline_mode<synchronous>, transform_indices = @transform_5, window_bounds = array<i64: 1, 4>}, {pipeline_mode = #tpu.pipeline_mode<synchronous>, transform_indices = @transform_6, window_bounds = array<i64: 1, 4>}, {pipeline_mode = #tpu.pipeline_mode<synchronous>, transform_indices = @transform_7, window_bounds = array<i64: 9, 4>}, {pipeline_mode = #tpu.pipeline_mode<synchronous>, transform_indices = @transform_8, window_bounds = array<i64: 1, 4>}, {pipeline_mode = #tpu.pipeline_mode<synchronous>, transform_indices = @transform_9, window_bounds = array<i64: 1, 4>}, {pipeline_mode = #tpu.pipeline_mode<synchronous>, transform_indices = @transform_10, window_bounds = array<i64: 16, 8>}, {pipeline_mode = #tpu.pipeline_mode<synchronous>, transform_indices = @transform_11, window_bounds = array<i64: 4, 8>}, {pipeline_mode = #tpu.pipeline_mode<synchronous>, transform_indices = @transform_12, window_bounds = array<i64: 1, 8>}, {pipeline_mode = #tpu.pipeline_mode<synchronous>, transform_indices = @transform_13, window_bounds = array<i64: 1, 8>}, {transform_indices = @transform_14, window_bounds = array<i64: 1, 64, 8>}]} {
    %c0 = arith.constant 0 : index
    %c0_0 = arith.constant 0 : index
    %c0_1 = arith.constant 0 : index
    %0 = vector.load %arg1[%c0, %c0_0, %c0_1] : memref<1x64x16xf32, #tpu.memory_space<vmem>>, vector<1x64x16xf32>
    %1 = vector.shape_cast %0 : vector<1x64x16xf32> to vector<64x16xf32>
    %cst = arith.constant 0.000000e+00 : f32
    %2 = vector.broadcast %cst : f32 to vector<96x16xf32>
    %c0_2 = arith.constant 0 : index
    %c0_3 = arith.constant 0 : index
    %3 = vector.load %arg16[%c0_2, %c0_3] : memref<96x16xf32, #tpu.memory_space<vmem>>, vector<96x16xf32>
    tpu.vector_store %arg16[%c0_2, %c0_3], %2 {strides = array<i32>} : memref<96x16xf32, #tpu.memory_space<vmem>>, vector<96x16xf32>,
    %c16 = arith.constant 16 : index
    %c0_4 = arith.constant 0 : index
    %4 = vector.load %arg16[%c16, %c0_4] : memref<96x16xf32, #tpu.memory_space<vmem>>, vector<64x16xf32>
    tpu.vector_store %arg16[%c16, %c0_4], %1 {strides = array<i32>} : memref<96x16xf32, #tpu.memory_space<vmem>>, vector<64x16xf32>,
    %5 = tpu.iota {dimensions = array<i32: 0>} : vector<64x16xi32>
    %c8_i32 = arith.constant 8 : i32
    %c0_i32 = arith.constant 0 : i32
    %6 = arith.cmpi eq, %c8_i32, %c0_i32 : i32
    %c1_i32 = arith.constant 1 : i32
    %7 = arith.select %6, %c1_i32, %c8_i32 : i32
    %8 = vector.broadcast %7 : i32 to vector<64x16xi32>
    %9 = arith.remsi %5, %8 : vector<64x16xi32>
    %c0_i32_5 = arith.constant 0 : i32
    %10 = vector.broadcast %c0_i32_5 : i32 to vector<64x16xi32>
    %11 = arith.cmpi ne, %9, %10 : vector<64x16xi32>
    %c0_i32_6 = arith.constant 0 : i32
    %12 = vector.broadcast %c0_i32_6 : i32 to vector<64x16xi32>
    %13 = arith.cmpi slt, %9, %12 : vector<64x16xi32>
    %c0_i32_7 = arith.constant 0 : i32
    %14 = arith.cmpi slt, %7, %c0_i32_7 : i32
    %15 = vector.broadcast %14 : i1 to vector<64x16xi1>
    %16 = vector.broadcast %15 : vector<64x16xi1> to vector<64x16xi1>
    %17 = arith.xori %13, %16 : vector<64x16xi1>
    %18 = arith.andi %17, %11 : vector<64x16xi1>
    %19 = vector.broadcast %7 : i32 to vector<64x16xi32>
    %20 = arith.addi %9, %19 : vector<64x16xi32>
    %21 = arith.select %18, %20, %9 : vector<64x16xi1>, vector<64x16xi32>
    %cst_8 = arith.constant 0.000000e+00 : f32
    %22 = vector.broadcast %cst_8 : f32 to vector<64x16xf32>
    %c0_9 = arith.constant 0 : index
    %c0_10 = arith.constant 0 : index
    %23 = vector.load %arg2[%c0_9, %c0_10] : memref<9x16xf32, #tpu.memory_space<vmem>>, vector<1x16xf32>
    %c7 = arith.constant 7 : index
    %c0_11 = arith.constant 0 : index
    %24 = vector.load %arg16[%c7, %c0_11] : memref<96x16xf32, #tpu.memory_space<vmem>>, vector<64x16xf32>
    %c0_i32_12 = arith.constant 0 : i32
    %25 = vector.broadcast %c0_i32_12 : i32 to vector<64x16xi32>
    %26 = arith.cmpi sgt, %21, %25 : vector<64x16xi32>
    %cst_13 = arith.constant 0.000000e+00 : f32
    %27 = vector.broadcast %cst_13 : f32 to vector<64x16xf32>
    %28 = arith.select %26, %24, %27 : vector<64x16xi1>, vector<64x16xf32>
    %29 = vector.broadcast %23 : vector<1x16xf32> to vector<64x16xf32>
    %30 = arith.mulf %28, %29 : vector<64x16xf32>
    %31 = arith.addf %22, %30 : vector<64x16xf32>
    %c1 = arith.constant 1 : index
    %c0_14 = arith.constant 0 : index
    %32 = vector.load %arg2[%c1, %c0_14] : memref<9x16xf32, #tpu.memory_space<vmem>>, vector<1x16xf32>
    %c8 = arith.constant 8 : index
    %c0_15 = arith.constant 0 : index
    %33 = vector.load %arg16[%c8, %c0_15] : memref<96x16xf32, #tpu.memory_space<vmem>>, vector<64x16xf32>
    %34 = vector.broadcast %32 : vector<1x16xf32> to vector<64x16xf32>
    %35 = arith.mulf %33, %34 : vector<64x16xf32>
    %36 = arith.addf %31, %35 : vector<64x16xf32>
    %c2 = arith.constant 2 : index
    %c0_16 = arith.constant 0 : index
    %37 = vector.load %arg2[%c2, %c0_16] : memref<9x16xf32, #tpu.memory_space<vmem>>, vector<1x16xf32>
    %c9 = arith.constant 9 : index
    %c0_17 = arith.constant 0 : index
    %38 = vector.load %arg16[%c9, %c0_17] : memref<96x16xf32, #tpu.memory_space<vmem>>, vector<64x16xf32>
    %c7_i32 = arith.constant 7 : i32
    %39 = vector.broadcast %c7_i32 : i32 to vector<64x16xi32>
    %40 = arith.cmpi slt, %21, %39 : vector<64x16xi32>
    %cst_18 = arith.constant 0.000000e+00 : f32
    %41 = vector.broadcast %cst_18 : f32 to vector<64x16xf32>
    %42 = arith.select %40, %38, %41 : vector<64x16xi1>, vector<64x16xf32>
    %43 = vector.broadcast %37 : vector<1x16xf32> to vector<64x16xf32>
    %44 = arith.mulf %42, %43 : vector<64x16xf32>
    %45 = arith.addf %36, %44 : vector<64x16xf32>
    %c3 = arith.constant 3 : index
    %c0_19 = arith.constant 0 : index
    %46 = vector.load %arg2[%c3, %c0_19] : memref<9x16xf32, #tpu.memory_space<vmem>>, vector<1x16xf32>
    %c15 = arith.constant 15 : index
    %c0_20 = arith.constant 0 : index
    %47 = vector.load %arg16[%c15, %c0_20] : memref<96x16xf32, #tpu.memory_space<vmem>>, vector<64x16xf32>
    %c0_i32_21 = arith.constant 0 : i32
    %48 = vector.broadcast %c0_i32_21 : i32 to vector<64x16xi32>
    %49 = arith.cmpi sgt, %21, %48 : vector<64x16xi32>
    %cst_22 = arith.constant 0.000000e+00 : f32
    %50 = vector.broadcast %cst_22 : f32 to vector<64x16xf32>
    %51 = arith.select %49, %47, %50 : vector<64x16xi1>, vector<64x16xf32>
    %52 = vector.broadcast %46 : vector<1x16xf32> to vector<64x16xf32>
    %53 = arith.mulf %51, %52 : vector<64x16xf32>
    %54 = arith.addf %45, %53 : vector<64x16xf32>
    %c4 = arith.constant 4 : index
    %c0_23 = arith.constant 0 : index
    %55 = vector.load %arg2[%c4, %c0_23] : memref<9x16xf32, #tpu.memory_space<vmem>>, vector<1x16xf32>
    %c16_24 = arith.constant 16 : index
    %c0_25 = arith.constant 0 : index
    %56 = vector.load %arg16[%c16_24, %c0_25] : memref<96x16xf32, #tpu.memory_space<vmem>>, vector<64x16xf32>
    %57 = vector.broadcast %55 : vector<1x16xf32> to vector<64x16xf32>
    %58 = arith.mulf %56, %57 : vector<64x16xf32>
    %59 = arith.addf %54, %58 : vector<64x16xf32>
    %c5 = arith.constant 5 : index
    %c0_26 = arith.constant 0 : index
    %60 = vector.load %arg2[%c5, %c0_26] : memref<9x16xf32, #tpu.memory_space<vmem>>, vector<1x16xf32>
    %c17 = arith.constant 17 : index
    %c0_27 = arith.constant 0 : index
    %61 = vector.load %arg16[%c17, %c0_27] : memref<96x16xf32, #tpu.memory_space<vmem>>, vector<64x16xf32>
    %c7_i32_28 = arith.constant 7 : i32
    %62 = vector.broadcast %c7_i32_28 : i32 to vector<64x16xi32>
    %63 = arith.cmpi slt, %21, %62 : vector<64x16xi32>
    %cst_29 = arith.constant 0.000000e+00 : f32
    %64 = vector.broadcast %cst_29 : f32 to vector<64x16xf32>
    %65 = arith.select %63, %61, %64 : vector<64x16xi1>, vector<64x16xf32>
    %66 = vector.broadcast %60 : vector<1x16xf32> to vector<64x16xf32>
    %67 = arith.mulf %65, %66 : vector<64x16xf32>
    %68 = arith.addf %59, %67 : vector<64x16xf32>
    %c6 = arith.constant 6 : index
    %c0_30 = arith.constant 0 : index
    %69 = vector.load %arg2[%c6, %c0_30] : memref<9x16xf32, #tpu.memory_space<vmem>>, vector<1x16xf32>
    %c23 = arith.constant 23 : index
    %c0_31 = arith.constant 0 : index
    %70 = vector.load %arg16[%c23, %c0_31] : memref<96x16xf32, #tpu.memory_space<vmem>>, vector<64x16xf32>
    %c0_i32_32 = arith.constant 0 : i32
    %71 = vector.broadcast %c0_i32_32 : i32 to vector<64x16xi32>
    %72 = arith.cmpi sgt, %21, %71 : vector<64x16xi32>
    %cst_33 = arith.constant 0.000000e+00 : f32
    %73 = vector.broadcast %cst_33 : f32 to vector<64x16xf32>
    %74 = arith.select %72, %70, %73 : vector<64x16xi1>, vector<64x16xf32>
    %75 = vector.broadcast %69 : vector<1x16xf32> to vector<64x16xf32>
    %76 = arith.mulf %74, %75 : vector<64x16xf32>
    %77 = arith.addf %68, %76 : vector<64x16xf32>
    %c7_34 = arith.constant 7 : index
    %c0_35 = arith.constant 0 : index
    %78 = vector.load %arg2[%c7_34, %c0_35] : memref<9x16xf32, #tpu.memory_space<vmem>>, vector<1x16xf32>
    %c24 = arith.constant 24 : index
    %c0_36 = arith.constant 0 : index
    %79 = vector.load %arg16[%c24, %c0_36] : memref<96x16xf32, #tpu.memory_space<vmem>>, vector<64x16xf32>
    %80 = vector.broadcast %78 : vector<1x16xf32> to vector<64x16xf32>
    %81 = arith.mulf %79, %80 : vector<64x16xf32>
    %82 = arith.addf %77, %81 : vector<64x16xf32>
    %c8_37 = arith.constant 8 : index
    %c0_38 = arith.constant 0 : index
    %83 = vector.load %arg2[%c8_37, %c0_38] : memref<9x16xf32, #tpu.memory_space<vmem>>, vector<1x16xf32>
    %c25 = arith.constant 25 : index
    %c0_39 = arith.constant 0 : index
    %84 = vector.load %arg16[%c25, %c0_39] : memref<96x16xf32, #tpu.memory_space<vmem>>, vector<64x16xf32>
    %c7_i32_40 = arith.constant 7 : i32
    %85 = vector.broadcast %c7_i32_40 : i32 to vector<64x16xi32>
    %86 = arith.cmpi slt, %21, %85 : vector<64x16xi32>
    %cst_41 = arith.constant 0.000000e+00 : f32
    %87 = vector.broadcast %cst_41 : f32 to vector<64x16xf32>
    %88 = arith.select %86, %84, %87 : vector<64x16xi1>, vector<64x16xf32>
    %89 = vector.broadcast %83 : vector<1x16xf32> to vector<64x16xf32>
    %90 = arith.mulf %88, %89 : vector<64x16xf32>
    %91 = arith.addf %82, %90 : vector<64x16xf32>
    %c0_42 = arith.constant 0 : index
    %c0_43 = arith.constant 0 : index
    %92 = vector.load %arg3[%c0_42, %c0_43] : memref<1x16xf32, #tpu.memory_space<vmem>>, vector<1x16xf32>
    %93 = vector.broadcast %92 : vector<1x16xf32> to vector<64x16xf32>
    %94 = arith.mulf %91, %93 : vector<64x16xf32>
    %c0_44 = arith.constant 0 : index
    %c0_45 = arith.constant 0 : index
    %95 = vector.load %arg4[%c0_44, %c0_45] : memref<1x16xf32, #tpu.memory_space<vmem>>, vector<1x16xf32>
    %96 = vector.broadcast %95 : vector<1x16xf32> to vector<64x16xf32>
    %97 = arith.addf %94, %96 : vector<64x16xf32>
    %c0_46 = arith.constant 0 : index
    %c0_47 = arith.constant 0 : index
    %98 = vector.load %arg5[%c0_46, %c0_47] : memref<16x4xf32, #tpu.memory_space<vmem>>, vector<16x4xf32>
    %cst_48 = arith.constant dense<0.000000e+00> : vector<64x4xf32>
    %99 = tpu.matmul %1, %98, %cst_48 {dimension_numbers = #tpu.dot_dimension_numbers<[1], [0], [0], [1], [0, 0, 1, 1], [], []>} : vector<64x16xf32>, vector<16x4xf32>, vector<64x4xf32> -> vector<64x4xf32>
    %c0_49 = arith.constant 0 : index
    %c0_50 = arith.constant 0 : index
    %100 = vector.load %arg6[%c0_49, %c0_50] : memref<1x4xf32, #tpu.memory_space<vmem>>, vector<1x4xf32>
    %101 = vector.broadcast %100 : vector<1x4xf32> to vector<64x4xf32>
    %102 = arith.mulf %99, %101 : vector<64x4xf32>
    %c0_51 = arith.constant 0 : index
    %c0_52 = arith.constant 0 : index
    %103 = vector.load %arg7[%c0_51, %c0_52] : memref<1x4xf32, #tpu.memory_space<vmem>>, vector<1x4xf32>
    %104 = vector.broadcast %103 : vector<1x4xf32> to vector<64x4xf32>
    %105 = arith.addf %102, %104 : vector<64x4xf32>
    %cst_53 = arith.constant 0.000000e+00 : f32
    %106 = vector.broadcast %cst_53 : f32 to vector<64x4xf32>
    %107 = arith.maximumf %105, %106 : vector<64x4xf32>
    %cst_54 = arith.constant 0.000000e+00 : f32
    %108 = vector.broadcast %cst_54 : f32 to vector<96x4xf32>
    %c0_55 = arith.constant 0 : index
    %c0_56 = arith.constant 0 : index
    %109 = vector.load %arg17[%c0_55, %c0_56] : memref<96x4xf32, #tpu.memory_space<vmem>>, vector<96x4xf32>
    tpu.vector_store %arg17[%c0_55, %c0_56], %108 {strides = array<i32>} : memref<96x4xf32, #tpu.memory_space<vmem>>, vector<96x4xf32>,
    %c16_57 = arith.constant 16 : index
    %c0_58 = arith.constant 0 : index
    %110 = vector.load %arg17[%c16_57, %c0_58] : memref<96x4xf32, #tpu.memory_space<vmem>>, vector<64x4xf32>
    tpu.vector_store %arg17[%c16_57, %c0_58], %107 {strides = array<i32>} : memref<96x4xf32, #tpu.memory_space<vmem>>, vector<64x4xf32>,
    %111 = tpu.iota {dimensions = array<i32: 0>} : vector<64x4xi32>
    %c8_i32_59 = arith.constant 8 : i32
    %c0_i32_60 = arith.constant 0 : i32
    %112 = arith.cmpi eq, %c8_i32_59, %c0_i32_60 : i32
    %c1_i32_61 = arith.constant 1 : i32
    %113 = arith.select %112, %c1_i32_61, %c8_i32_59 : i32
    %114 = vector.broadcast %113 : i32 to vector<64x4xi32>
    %115 = arith.remsi %111, %114 : vector<64x4xi32>
    %c0_i32_62 = arith.constant 0 : i32
    %116 = vector.broadcast %c0_i32_62 : i32 to vector<64x4xi32>
    %117 = arith.cmpi ne, %115, %116 : vector<64x4xi32>
    %c0_i32_63 = arith.constant 0 : i32
    %118 = vector.broadcast %c0_i32_63 : i32 to vector<64x4xi32>
    %119 = arith.cmpi slt, %115, %118 : vector<64x4xi32>
    %c0_i32_64 = arith.constant 0 : i32
    %120 = arith.cmpi slt, %113, %c0_i32_64 : i32
    %121 = vector.broadcast %120 : i1 to vector<64x4xi1>
    %122 = vector.broadcast %121 : vector<64x4xi1> to vector<64x4xi1>
    %123 = arith.xori %119, %122 : vector<64x4xi1>
    %124 = arith.andi %123, %117 : vector<64x4xi1>
    %125 = vector.broadcast %113 : i32 to vector<64x4xi32>
    %126 = arith.addi %115, %125 : vector<64x4xi32>
    %127 = arith.select %124, %126, %115 : vector<64x4xi1>, vector<64x4xi32>
    %cst_65 = arith.constant 0.000000e+00 : f32
    %128 = vector.broadcast %cst_65 : f32 to vector<64x4xf32>
    %c0_66 = arith.constant 0 : index
    %c0_67 = arith.constant 0 : index
    %129 = vector.load %arg8[%c0_66, %c0_67] : memref<9x4xf32, #tpu.memory_space<vmem>>, vector<1x4xf32>
    %c7_68 = arith.constant 7 : index
    %c0_69 = arith.constant 0 : index
    %130 = vector.load %arg17[%c7_68, %c0_69] : memref<96x4xf32, #tpu.memory_space<vmem>>, vector<64x4xf32>
    %c0_i32_70 = arith.constant 0 : i32
    %131 = vector.broadcast %c0_i32_70 : i32 to vector<64x4xi32>
    %132 = arith.cmpi sgt, %127, %131 : vector<64x4xi32>
    %cst_71 = arith.constant 0.000000e+00 : f32
    %133 = vector.broadcast %cst_71 : f32 to vector<64x4xf32>
    %134 = arith.select %132, %130, %133 : vector<64x4xi1>, vector<64x4xf32>
    %135 = vector.broadcast %129 : vector<1x4xf32> to vector<64x4xf32>
    %136 = arith.mulf %134, %135 : vector<64x4xf32>
    %137 = arith.addf %128, %136 : vector<64x4xf32>
    %c1_72 = arith.constant 1 : index
    %c0_73 = arith.constant 0 : index
    %138 = vector.load %arg8[%c1_72, %c0_73] : memref<9x4xf32, #tpu.memory_space<vmem>>, vector<1x4xf32>
    %c8_74 = arith.constant 8 : index
    %c0_75 = arith.constant 0 : index
    %139 = vector.load %arg17[%c8_74, %c0_75] : memref<96x4xf32, #tpu.memory_space<vmem>>, vector<64x4xf32>
    %140 = vector.broadcast %138 : vector<1x4xf32> to vector<64x4xf32>
    %141 = arith.mulf %139, %140 : vector<64x4xf32>
    %142 = arith.addf %137, %141 : vector<64x4xf32>
    %c2_76 = arith.constant 2 : index
    %c0_77 = arith.constant 0 : index
    %143 = vector.load %arg8[%c2_76, %c0_77] : memref<9x4xf32, #tpu.memory_space<vmem>>, vector<1x4xf32>
    %c9_78 = arith.constant 9 : index
    %c0_79 = arith.constant 0 : index
    %144 = vector.load %arg17[%c9_78, %c0_79] : memref<96x4xf32, #tpu.memory_space<vmem>>, vector<64x4xf32>
    %c7_i32_80 = arith.constant 7 : i32
    %145 = vector.broadcast %c7_i32_80 : i32 to vector<64x4xi32>
    %146 = arith.cmpi slt, %127, %145 : vector<64x4xi32>
    %cst_81 = arith.constant 0.000000e+00 : f32
    %147 = vector.broadcast %cst_81 : f32 to vector<64x4xf32>
    %148 = arith.select %146, %144, %147 : vector<64x4xi1>, vector<64x4xf32>
    %149 = vector.broadcast %143 : vector<1x4xf32> to vector<64x4xf32>
    %150 = arith.mulf %148, %149 : vector<64x4xf32>
    %151 = arith.addf %142, %150 : vector<64x4xf32>
    %c3_82 = arith.constant 3 : index
    %c0_83 = arith.constant 0 : index
    %152 = vector.load %arg8[%c3_82, %c0_83] : memref<9x4xf32, #tpu.memory_space<vmem>>, vector<1x4xf32>
    %c15_84 = arith.constant 15 : index
    %c0_85 = arith.constant 0 : index
    %153 = vector.load %arg17[%c15_84, %c0_85] : memref<96x4xf32, #tpu.memory_space<vmem>>, vector<64x4xf32>
    %c0_i32_86 = arith.constant 0 : i32
    %154 = vector.broadcast %c0_i32_86 : i32 to vector<64x4xi32>
    %155 = arith.cmpi sgt, %127, %154 : vector<64x4xi32>
    %cst_87 = arith.constant 0.000000e+00 : f32
    %156 = vector.broadcast %cst_87 : f32 to vector<64x4xf32>
    %157 = arith.select %155, %153, %156 : vector<64x4xi1>, vector<64x4xf32>
    %158 = vector.broadcast %152 : vector<1x4xf32> to vector<64x4xf32>
    %159 = arith.mulf %157, %158 : vector<64x4xf32>
    %160 = arith.addf %151, %159 : vector<64x4xf32>
    %c4_88 = arith.constant 4 : index
    %c0_89 = arith.constant 0 : index
    %161 = vector.load %arg8[%c4_88, %c0_89] : memref<9x4xf32, #tpu.memory_space<vmem>>, vector<1x4xf32>
    %c16_90 = arith.constant 16 : index
    %c0_91 = arith.constant 0 : index
    %162 = vector.load %arg17[%c16_90, %c0_91] : memref<96x4xf32, #tpu.memory_space<vmem>>, vector<64x4xf32>
    %163 = vector.broadcast %161 : vector<1x4xf32> to vector<64x4xf32>
    %164 = arith.mulf %162, %163 : vector<64x4xf32>
    %165 = arith.addf %160, %164 : vector<64x4xf32>
    %c5_92 = arith.constant 5 : index
    %c0_93 = arith.constant 0 : index
    %166 = vector.load %arg8[%c5_92, %c0_93] : memref<9x4xf32, #tpu.memory_space<vmem>>, vector<1x4xf32>
    %c17_94 = arith.constant 17 : index
    %c0_95 = arith.constant 0 : index
    %167 = vector.load %arg17[%c17_94, %c0_95] : memref<96x4xf32, #tpu.memory_space<vmem>>, vector<64x4xf32>
    %c7_i32_96 = arith.constant 7 : i32
    %168 = vector.broadcast %c7_i32_96 : i32 to vector<64x4xi32>
    %169 = arith.cmpi slt, %127, %168 : vector<64x4xi32>
    %cst_97 = arith.constant 0.000000e+00 : f32
    %170 = vector.broadcast %cst_97 : f32 to vector<64x4xf32>
    %171 = arith.select %169, %167, %170 : vector<64x4xi1>, vector<64x4xf32>
    %172 = vector.broadcast %166 : vector<1x4xf32> to vector<64x4xf32>
    %173 = arith.mulf %171, %172 : vector<64x4xf32>
    %174 = arith.addf %165, %173 : vector<64x4xf32>
    %c6_98 = arith.constant 6 : index
    %c0_99 = arith.constant 0 : index
    %175 = vector.load %arg8[%c6_98, %c0_99] : memref<9x4xf32, #tpu.memory_space<vmem>>, vector<1x4xf32>
    %c23_100 = arith.constant 23 : index
    %c0_101 = arith.constant 0 : index
    %176 = vector.load %arg17[%c23_100, %c0_101] : memref<96x4xf32, #tpu.memory_space<vmem>>, vector<64x4xf32>
    %c0_i32_102 = arith.constant 0 : i32
    %177 = vector.broadcast %c0_i32_102 : i32 to vector<64x4xi32>
    %178 = arith.cmpi sgt, %127, %177 : vector<64x4xi32>
    %cst_103 = arith.constant 0.000000e+00 : f32
    %179 = vector.broadcast %cst_103 : f32 to vector<64x4xf32>
    %180 = arith.select %178, %176, %179 : vector<64x4xi1>, vector<64x4xf32>
    %181 = vector.broadcast %175 : vector<1x4xf32> to vector<64x4xf32>
    %182 = arith.mulf %180, %181 : vector<64x4xf32>
    %183 = arith.addf %174, %182 : vector<64x4xf32>
    %c7_104 = arith.constant 7 : index
    %c0_105 = arith.constant 0 : index
    %184 = vector.load %arg8[%c7_104, %c0_105] : memref<9x4xf32, #tpu.memory_space<vmem>>, vector<1x4xf32>
    %c24_106 = arith.constant 24 : index
    %c0_107 = arith.constant 0 : index
    %185 = vector.load %arg17[%c24_106, %c0_107] : memref<96x4xf32, #tpu.memory_space<vmem>>, vector<64x4xf32>
    %186 = vector.broadcast %184 : vector<1x4xf32> to vector<64x4xf32>
    %187 = arith.mulf %185, %186 : vector<64x4xf32>
    %188 = arith.addf %183, %187 : vector<64x4xf32>
    %c8_108 = arith.constant 8 : index
    %c0_109 = arith.constant 0 : index
    %189 = vector.load %arg8[%c8_108, %c0_109] : memref<9x4xf32, #tpu.memory_space<vmem>>, vector<1x4xf32>
    %c25_110 = arith.constant 25 : index
    %c0_111 = arith.constant 0 : index
    %190 = vector.load %arg17[%c25_110, %c0_111] : memref<96x4xf32, #tpu.memory_space<vmem>>, vector<64x4xf32>
    %c7_i32_112 = arith.constant 7 : i32
    %191 = vector.broadcast %c7_i32_112 : i32 to vector<64x4xi32>
    %192 = arith.cmpi slt, %127, %191 : vector<64x4xi32>
    %cst_113 = arith.constant 0.000000e+00 : f32
    %193 = vector.broadcast %cst_113 : f32 to vector<64x4xf32>
    %194 = arith.select %192, %190, %193 : vector<64x4xi1>, vector<64x4xf32>
    %195 = vector.broadcast %189 : vector<1x4xf32> to vector<64x4xf32>
    %196 = arith.mulf %194, %195 : vector<64x4xf32>
    %197 = arith.addf %188, %196 : vector<64x4xf32>
    %c0_114 = arith.constant 0 : index
    %c0_115 = arith.constant 0 : index
    %198 = vector.load %arg9[%c0_114, %c0_115] : memref<1x4xf32, #tpu.memory_space<vmem>>, vector<1x4xf32>
    %199 = vector.broadcast %198 : vector<1x4xf32> to vector<64x4xf32>
    %200 = arith.mulf %197, %199 : vector<64x4xf32>
    %c0_116 = arith.constant 0 : index
    %c0_117 = arith.constant 0 : index
    %201 = vector.load %arg10[%c0_116, %c0_117] : memref<1x4xf32, #tpu.memory_space<vmem>>, vector<1x4xf32>
    %202 = vector.broadcast %201 : vector<1x4xf32> to vector<64x4xf32>
    %203 = arith.addf %200, %202 : vector<64x4xf32>
    %c0_118 = arith.constant 0 : index
    %c0_119 = arith.constant 0 : index
    %204 = vector.load %arg11[%c0_118, %c0_119] : memref<16x8xf32, #tpu.memory_space<vmem>>, vector<16x8xf32>
    %cst_120 = arith.constant dense<0.000000e+00> : vector<64x8xf32>
    %205 = tpu.matmul %97, %204, %cst_120 {dimension_numbers = #tpu.dot_dimension_numbers<[1], [0], [0], [1], [0, 0, 1, 1], [], []>} : vector<64x16xf32>, vector<16x8xf32>, vector<64x8xf32> -> vector<64x8xf32>
    %c0_121 = arith.constant 0 : index
    %c0_122 = arith.constant 0 : index
    %206 = vector.load %arg12[%c0_121, %c0_122] : memref<4x8xf32, #tpu.memory_space<vmem>>, vector<4x8xf32>
    %cst_123 = arith.constant dense<0.000000e+00> : vector<64x8xf32>
    %207 = tpu.matmul %203, %206, %cst_123 {dimension_numbers = #tpu.dot_dimension_numbers<[1], [0], [0], [1], [0, 0, 1, 1], [], []>} : vector<64x4xf32>, vector<4x8xf32>, vector<64x8xf32> -> vector<64x8xf32>
    %208 = arith.addf %205, %207 : vector<64x8xf32>
    %c0_124 = arith.constant 0 : index
    %c0_125 = arith.constant 0 : index
    %209 = vector.load %arg13[%c0_124, %c0_125] : memref<1x8xf32, #tpu.memory_space<vmem>>, vector<1x8xf32>
    %210 = vector.broadcast %209 : vector<1x8xf32> to vector<64x8xf32>
    %211 = arith.mulf %208, %210 : vector<64x8xf32>
    %c0_126 = arith.constant 0 : index
    %c0_127 = arith.constant 0 : index
    %212 = vector.load %arg14[%c0_126, %c0_127] : memref<1x8xf32, #tpu.memory_space<vmem>>, vector<1x8xf32>
    %213 = vector.broadcast %212 : vector<1x8xf32> to vector<64x8xf32>
    %214 = arith.addf %211, %213 : vector<64x8xf32>
    %cst_128 = arith.constant 0.000000e+00 : f32
    %215 = vector.broadcast %cst_128 : f32 to vector<64x8xf32>
    %216 = arith.maximumf %214, %215 : vector<64x8xf32>
    %c0_129 = arith.constant 0 : index
    %c0_130 = arith.constant 0 : index
    %c0_131 = arith.constant 0 : index
    %217 = vector.load %arg15[%c0_129, %c0_130, %c0_131] : memref<1x64x8xf32, #tpu.memory_space<vmem>>, vector<1x64x8xf32>
    %218 = vector.shape_cast %217 : vector<1x64x8xf32> to vector<64x8xf32>
    %219 = vector.shape_cast %216 : vector<64x8xf32> to vector<1x64x8xf32>
    tpu.vector_store %arg15[%c0_129, %c0_130, %c0_131], %219 {strides = array<i32>} : memref<1x64x8xf32, #tpu.memory_space<vmem>>, vector<1x64x8xf32>,
    return
  }
  func.func @transform_0(%arg0: i32) -> (i32, i32, i32) {
    %c0_i32 = arith.constant 0 : i32
    %c0_i32_0 = arith.constant 0 : i32
    %c0_i32_1 = arith.constant 0 : i32
    return %arg0, %c0_i32, %c0_i32_0 : i32, i32, i32
  }
  func.func @transform_1(%arg0: i32) -> (i32, i32) {
    %c0_i32 = arith.constant 0 : i32
    %c0_i32_0 = arith.constant 0 : i32
    %c0_i32_1 = arith.constant 0 : i32
    return %c0_i32, %c0_i32_0 : i32, i32
  }
  func.func @transform_2(%arg0: i32) -> (i32, i32) {
    %c0_i32 = arith.constant 0 : i32
    %c0_i32_0 = arith.constant 0 : i32
    %c0_i32_1 = arith.constant 0 : i32
    return %c0_i32, %c0_i32_0 : i32, i32
  }
  func.func @transform_3(%arg0: i32) -> (i32, i32) {
    %c0_i32 = arith.constant 0 : i32
    %c0_i32_0 = arith.constant 0 : i32
    %c0_i32_1 = arith.constant 0 : i32
    return %c0_i32, %c0_i32_0 : i32, i32
  }
  func.func @transform_4(%arg0: i32) -> (i32, i32) {
    %c0_i32 = arith.constant 0 : i32
    %c0_i32_0 = arith.constant 0 : i32
    %c0_i32_1 = arith.constant 0 : i32
    return %c0_i32, %c0_i32_0 : i32, i32
  }
  func.func @transform_5(%arg0: i32) -> (i32, i32) {
    %c0_i32 = arith.constant 0 : i32
    %c0_i32_0 = arith.constant 0 : i32
    %c0_i32_1 = arith.constant 0 : i32
    return %c0_i32, %c0_i32_0 : i32, i32
  }
  func.func @transform_6(%arg0: i32) -> (i32, i32) {
    %c0_i32 = arith.constant 0 : i32
    %c0_i32_0 = arith.constant 0 : i32
    %c0_i32_1 = arith.constant 0 : i32
    return %c0_i32, %c0_i32_0 : i32, i32
  }
  func.func @transform_7(%arg0: i32) -> (i32, i32) {
    %c0_i32 = arith.constant 0 : i32
    %c0_i32_0 = arith.constant 0 : i32
    %c0_i32_1 = arith.constant 0 : i32
    return %c0_i32, %c0_i32_0 : i32, i32
  }
  func.func @transform_8(%arg0: i32) -> (i32, i32) {
    %c0_i32 = arith.constant 0 : i32
    %c0_i32_0 = arith.constant 0 : i32
    %c0_i32_1 = arith.constant 0 : i32
    return %c0_i32, %c0_i32_0 : i32, i32
  }
  func.func @transform_9(%arg0: i32) -> (i32, i32) {
    %c0_i32 = arith.constant 0 : i32
    %c0_i32_0 = arith.constant 0 : i32
    %c0_i32_1 = arith.constant 0 : i32
    return %c0_i32, %c0_i32_0 : i32, i32
  }
  func.func @transform_10(%arg0: i32) -> (i32, i32) {
    %c0_i32 = arith.constant 0 : i32
    %c0_i32_0 = arith.constant 0 : i32
    %c0_i32_1 = arith.constant 0 : i32
    return %c0_i32, %c0_i32_0 : i32, i32
  }
  func.func @transform_11(%arg0: i32) -> (i32, i32) {
    %c0_i32 = arith.constant 0 : i32
    %c0_i32_0 = arith.constant 0 : i32
    %c0_i32_1 = arith.constant 0 : i32
    return %c0_i32, %c0_i32_0 : i32, i32
  }
  func.func @transform_12(%arg0: i32) -> (i32, i32) {
    %c0_i32 = arith.constant 0 : i32
    %c0_i32_0 = arith.constant 0 : i32
    %c0_i32_1 = arith.constant 0 : i32
    return %c0_i32, %c0_i32_0 : i32, i32
  }
  func.func @transform_13(%arg0: i32) -> (i32, i32) {
    %c0_i32 = arith.constant 0 : i32
    %c0_i32_0 = arith.constant 0 : i32
    %c0_i32_1 = arith.constant 0 : i32
    return %c0_i32, %c0_i32_0 : i32, i32
  }
  func.func @transform_14(%arg0: i32) -> (i32, i32, i32) {
    %c0_i32 = arith.constant 0 : i32
    %c0_i32_0 = arith.constant 0 : i32
    %c0_i32_1 = arith.constant 0 : i32
    return %arg0, %c0_i32, %c0_i32_0 : i32, i32, i32
  }
}

</mosaic_0001>

<llo_original>
// kernel: tpu_custom_call.1
$region0: #{tpu_custom_call.1}
  #allocation0 [shape = 'u32[]', space=smem, size = 0x4, offset = 0x4, fixed_abs, tag = 'smem constant byte address 0x4 - core index']
  #allocation1 [shape = 'u32[72,128]{1,0:T(1,128)}', space=vmem, size = 0x9000, scoped, tag = 'internal scratch']
  #allocation2 [shape = 'f32[96,16]{1,0:T(8,128)}', space=vmem, size = 0xc000, scoped, tag = 'scratch operand']
  #allocation3 [shape = 'f32[96,4]{1,0:T(8,128)}', space=vmem, size = 0xc000, scoped, tag = 'scratch operand']
  %s0 = inlined_call_operand.vmem [shape: f32[2,64,16], index: 0, kind: input, shape index: {}]
  %s1 = inlined_call_operand.vmem [shape: f32[9,16], index: 1, kind: input, shape index: {}]
  %s2 = inlined_call_operand.vmem [shape: f32[1,16], index: 2, kind: input, shape index: {}]
  %s3 = inlined_call_operand.vmem [shape: f32[1,16], index: 3, kind: input, shape index: {}]
  %s4 = inlined_call_operand.vmem [shape: f32[16,4], index: 4, kind: input, shape index: {}]
  %s5 = inlined_call_operand.vmem [shape: f32[1,4], index: 5, kind: input, shape index: {}]
  %s6 = inlined_call_operand.vmem [shape: f32[1,4], index: 6, kind: input, shape index: {}]
  %s7 = inlined_call_operand.vmem [shape: f32[9,4], index: 7, kind: input, shape index: {}]
  %s8 = inlined_call_operand.vmem [shape: f32[1,4], index: 8, kind: input, shape index: {}]
  %s9 = inlined_call_operand.vmem [shape: f32[1,4], index: 9, kind: input, shape index: {}]
  %s10 = inlined_call_operand.vmem [shape: f32[16,8], index: 10, kind: input, shape index: {}]
  %s11 = inlined_call_operand.vmem [shape: f32[4,8], index: 11, kind: input, shape index: {}]
  %s12 = inlined_call_operand.vmem [shape: f32[1,8], index: 12, kind: input, shape index: {}]
  %s13 = inlined_call_operand.vmem [shape: f32[1,8], index: 13, kind: input, shape index: {}]
  %s14 = inlined_call_operand.vmem [shape: f32[2,64,8], index: 14, kind: output, shape index: {}]
  %s15 = sld [smem:[#allocation0]]
  $region89: #{tpu_custom_call.1} parent=0
    _
  %s17 = ssub.s32 1, %s15
  %s18 = scalar_select 0, %s17, %s15
  loop: start=0, step=1, limit=4
  $region2: #{tpu_custom_call.1} parent=0 // loop_pre_header
    _
  $region3: #{tpu_custom_call.1} parent=0 // loop_header
    %s20 = sphi 0, %s24
    %p21 = scmp.ge.s32.totalorder %s20, 4
    %s30 = sphi 0, %s32
    %s33 = sphi 0, %s30
    %s34 = sphi 0, %s33
    %s50 = sphi 0, %s34
    %s54 = sphi 0, %s54
    %s56 = sphi 0, %s54
    %s57 = sphi 0, %s56
    %s71 = sphi 0, %s57
    %s75 = sphi 0, %s75
    %s77 = sphi 0, %s75
    %s78 = sphi 0, %s77
    %s92 = sphi 0, %s78
    %s96 = sphi 0, %s96
    %s98 = sphi 0, %s96
    %s99 = sphi 0, %s98
    %s113 = sphi 0, %s99
    %s117 = sphi 0, %s117
    %s119 = sphi 0, %s117
    %s120 = sphi 0, %s119
    %s134 = sphi 0, %s120
    %s138 = sphi 0, %s138
    %s140 = sphi 0, %s138
    %s141 = sphi 0, %s140
    %s155 = sphi 0, %s141
    %s159 = sphi 0, %s159
    %s161 = sphi 0, %s159
    %s162 = sphi 0, %s161
    %s176 = sphi 0, %s162
    %s180 = sphi 0, %s180
    %s182 = sphi 0, %s180
    %s183 = sphi 0, %s182
    %s197 = sphi 0, %s183
    %s201 = sphi 0, %s201
    %s203 = sphi 0, %s201
    %s204 = sphi 0, %s203
    %s218 = sphi 0, %s204
    %s222 = sphi 0, %s222
    %s224 = sphi 0, %s222
    %s225 = sphi 0, %s224
    %s239 = sphi 0, %s225
    %s243 = sphi 0, %s243
    %s245 = sphi 0, %s243
    %s246 = sphi 0, %s245
    %s260 = sphi 0, %s246
    %s264 = sphi 0, %s264
    %s266 = sphi 0, %s264
    %s267 = sphi 0, %s266
    %s281 = sphi 0, %s267
    %s285 = sphi 0, %s285
    %s287 = sphi 0, %s285
    %s288 = sphi 0, %s287
    %s302 = sphi 0, %s288
    %s306 = sphi 0, %s306
    %s308 = sphi 0, %s306
    %s309 = sphi 0, %s308
    %s323 = sphi 0, %s309
    %s329 = sphi 0, %s331
    %s332 = sphi 0, %s329
    %s333 = sphi 0, %s332
    %s349 = sphi 0, %s333
  $region4: #{tpu_custom_call.1} parent=0 // loop_header_branch
    %23 = sbr.rel (%p21) target = $region8
  $region5: #{tpu_custom_call.1} parent=0 // loop_body
    %s25 = ssub.s32 %s20, 1
    %s26 = ssub.s32 %s20, 2
    %s27 = sadd.s32 %s20, 1
    %s28 = ssub.s32 %s20, %s27
    %p29 = scmp.eq.s32.totalorder %s28, 0
    %s31 = sadd.s32 %s30, 1
    %s32 = scalar_select %p29, %s30, %s31
    %p35 = pneg %p29
    %p36 = scmp.eq.s32.totalorder %s20, 1
    %p37 = por %p35, %p36
    %p38 = scmp.ne.s32.totalorder %s30, %s33
    %p39 = scmp.eq.s32.totalorder %s20, 0
    %p40 = por %p38, %p39
    %p41 = scmp.ne.s32.totalorder %s30, %s33
    %p42 = scmp.eq.s32.totalorder %s25, 1
    %p43 = por %p41, %p42
    %p44 = scmp.ne.s32.totalorder %s33, %s34
    %p45 = scmp.eq.s32.totalorder %s25, 0
    %p46 = por %p44, %p45
    %p47 = scmp.ne.s32.totalorder %s33, %s34
    %p48 = scmp.eq.s32.totalorder %s26, 1
    %p49 = por %p47, %p48
    %p51 = scmp.ne.s32.totalorder %s34, %s50
    %p52 = scmp.eq.s32.totalorder %s26, 0
    %p53 = por %p51, %p52
    %s55 = sadd.s32 %s54, 1
    %p58 = scmp.eq.s32.totalorder %s20, 1
    %p59 = scmp.ne.s32.totalorder %s54, %s56
    %p60 = scmp.eq.s32.totalorder %s20, 0
    %p61 = por %p59, %p60
    %p62 = scmp.ne.s32.totalorder %s54, %s56
    %p63 = scmp.eq.s32.totalorder %s25, 1
    %p64 = por %p62, %p63
    %p65 = scmp.ne.s32.totalorder %s56, %s57
    %p66 = scmp.eq.s32.totalorder %s25, 0
    %p67 = por %p65, %p66
    %p68 = scmp.ne.s32.totalorder %s56, %s57
    %p69 = scmp.eq.s32.totalorder %s26, 1
    %p70 = por %p68, %p69
    %p72 = scmp.ne.s32.totalorder %s57, %s71
    %p73 = scmp.eq.s32.totalorder %s26, 0
    %p74 = por %p72, %p73
    %s76 = sadd.s32 %s75, 1
    %p79 = scmp.eq.s32.totalorder %s20, 1
    %p80 = scmp.ne.s32.totalorder %s75, %s77
    %p81 = scmp.eq.s32.totalorder %s20, 0
    %p82 = por %p80, %p81
    %p83 = scmp.ne.s32.totalorder %s75, %s77
    %p84 = scmp.eq.s32.totalorder %s25, 1
    %p85 = por %p83, %p84
    %p86 = scmp.ne.s32.totalorder %s77, %s78
    %p87 = scmp.eq.s32.totalorder %s25, 0
    %p88 = por %p86, %p87
    %p89 = scmp.ne.s32.totalorder %s77, %s78
    %p90 = scmp.eq.s32.totalorder %s26, 1
    %p91 = por %p89, %p90
    %p93 = scmp.ne.s32.totalorder %s78, %s92
    %p94 = scmp.eq.s32.totalorder %s26, 0
    %p95 = por %p93, %p94
    %s97 = sadd.s32 %s96, 1
    %p100 = scmp.eq.s32.totalorder %s20, 1
    %p101 = scmp.ne.s32.totalorder %s96, %s98
    %p102 = scmp.eq.s32.totalorder %s20, 0
    %p103 = por %p101, %p102
    %p104 = scmp.ne.s32.totalorder %s96, %s98
    %p105 = scmp.eq.s32.totalorder %s25, 1
    %p106 = por %p104, %p105
    %p107 = scmp.ne.s32.totalorder %s98, %s99
    %p108 = scmp.eq.s32.totalorder %s25, 0
    %p109 = por %p107, %p108
    %p110 = scmp.ne.s32.totalorder %s98, %s99
    %p111 = scmp.eq.s32.totalorder %s26, 1
    %p112 = por %p110, %p111
    %p114 = scmp.ne.s32.totalorder %s99, %s113
    %p115 = scmp.eq.s32.totalorder %s26, 0
    %p116 = por %p114, %p115
    %s118 = sadd.s32 %s117, 1
    %p121 = scmp.eq.s32.totalorder %s20, 1
    %p122 = scmp.ne.s32.totalorder %s117, %s119
    %p123 = scmp.eq.s32.totalorder %s20, 0
    %p124 = por %p122, %p123
    %p125 = scmp.ne.s32.totalorder %s117, %s119
    %p126 = scmp.eq.s32.totalorder %s25, 1
    %p127 = por %p125, %p126
    %p128 = scmp.ne.s32.totalorder %s119, %s120
    %p129 = scmp.eq.s32.totalorder %s25, 0
    %p130 = por %p128, %p129
    %p131 = scmp.ne.s32.totalorder %s119, %s120
    %p132 = scmp.eq.s32.totalorder %s26, 1
    %p133 = por %p131, %p132
    %p135 = scmp.ne.s32.totalorder %s120, %s134
    %p136 = scmp.eq.s32.totalorder %s26, 0
    %p137 = por %p135, %p136
    %s139 = sadd.s32 %s138, 1
    %p142 = scmp.eq.s32.totalorder %s20, 1
    %p143 = scmp.ne.s32.totalorder %s138, %s140
    %p144 = scmp.eq.s32.totalorder %s20, 0
    %p145 = por %p143, %p144
    %p146 = scmp.ne.s32.totalorder %s138, %s140
    %p147 = scmp.eq.s32.totalorder %s25, 1
    %p148 = por %p146, %p147
    %p149 = scmp.ne.s32.totalorder %s140, %s141
    %p150 = scmp.eq.s32.totalorder %s25, 0
    %p151 = por %p149, %p150
    %p152 = scmp.ne.s32.totalorder %s140, %s141
    %p153 = scmp.eq.s32.totalorder %s26, 1
    %p154 = por %p152, %p153
    %p156 = scmp.ne.s32.totalorder %s141, %s155
    %p157 = scmp.eq.s32.totalorder %s26, 0
    %p158 = por %p156, %p157
    %s160 = sadd.s32 %s159, 1
    %p163 = scmp.eq.s32.totalorder %s20, 1
    %p164 = scmp.ne.s32.totalorder %s159, %s161
    %p165 = scmp.eq.s32.totalorder %s20, 0
    %p166 = por %p164, %p165
    %p167 = scmp.ne.s32.totalorder %s159, %s161
    %p168 = scmp.eq.s32.totalorder %s25, 1
    %p169 = por %p167, %p168
    %p170 = scmp.ne.s32.totalorder %s161, %s162
    %p171 = scmp.eq.s32.totalorder %s25, 0
    %p172 = por %p170, %p171
    %p173 = scmp.ne.s32.totalorder %s161, %s162
    %p174 = scmp.eq.s32.totalorder %s26, 1
    %p175 = por %p173, %p174
    %p177 = scmp.ne.s32.totalorder %s162, %s176
    %p178 = scmp.eq.s32.totalorder %s26, 0
    %p179 = por %p177, %p178
    %s181 = sadd.s32 %s180, 1
    %p184 = scmp.eq.s32.totalorder %s20, 1
    %p185 = scmp.ne.s32.totalorder %s180, %s182
    %p186 = scmp.eq.s32.totalorder %s20, 0
    %p187 = por %p185, %p186
    %p188 = scmp.ne.s32.totalorder %s180, %s182
    %p189 = scmp.eq.s32.totalorder %s25, 1
    %p190 = por %p188, %p189
    %p191 = scmp.ne.s32.totalorder %s182, %s183
    %p192 = scmp.eq.s32.totalorder %s25, 0
    %p193 = por %p191, %p192
    %p194 = scmp.ne.s32.totalorder %s182, %s183
    %p195 = scmp.eq.s32.totalorder %s26, 1
    %p196 = por %p194, %p195
    %p198 = scmp.ne.s32.totalorder %s183, %s197
    %p199 = scmp.eq.s32.totalorder %s26, 0
    %p200 = por %p198, %p199
    %s202 = sadd.s32 %s201, 1
    %p205 = scmp.eq.s32.totalorder %s20, 1
    %p206 = scmp.ne.s32.totalorder %s201, %s203
    %p207 = scmp.eq.s32.totalorder %s20, 0
    %p208 = por %p206, %p207
    %p209 = scmp.ne.s32.totalorder %s201, %s203
    %p210 = scmp.eq.s32.totalorder %s25, 1
    %p211 = por %p209, %p210
    %p212 = scmp.ne.s32.totalorder %s203, %s204
    %p213 = scmp.eq.s32.totalorder %s25, 0
    %p214 = por %p212, %p213
    %p215 = scmp.ne.s32.totalorder %s203, %s204
    %p216 = scmp.eq.s32.totalorder %s26, 1
    %p217 = por %p215, %p216
    %p219 = scmp.ne.s32.totalorder %s204, %s218
    %p220 = scmp.eq.s32.totalorder %s26, 0
    %p221 = por %p219, %p220
    %s223 = sadd.s32 %s222, 1
    %p226 = scmp.eq.s32.totalorder %s20, 1
    %p227 = scmp.ne.s32.totalorder %s222, %s224
    %p228 = scmp.eq.s32.totalorder %s20, 0
    %p229 = por %p227, %p228
    %p230 = scmp.ne.s32.totalorder %s222, %s224
    %p231 = scmp.eq.s32.totalorder %s25, 1
    %p232 = por %p230, %p231
    %p233 = scmp.ne.s32.totalorder %s224, %s225
    %p234 = scmp.eq.s32.totalorder %s25, 0
    %p235 = por %p233, %p234
    %p236 = scmp.ne.s32.totalorder %s224, %s225
    %p237 = scmp.eq.s32.totalorder %s26, 1
    %p238 = por %p236, %p237
    %p240 = scmp.ne.s32.totalorder %s225, %s239
    %p241 = scmp.eq.s32.totalorder %s26, 0
    %p242 = por %p240, %p241
    %s244 = sadd.s32 %s243, 1
    %p247 = scmp.eq.s32.totalorder %s20, 1
    %p248 = scmp.ne.s32.totalorder %s243, %s245
    %p249 = scmp.eq.s32.totalorder %s20, 0
    %p250 = por %p248, %p249
    %p251 = scmp.ne.s32.totalorder %s243, %s245
    %p252 = scmp.eq.s32.totalorder %s25, 1
    %p253 = por %p251, %p252
    %p254 = scmp.ne.s32.totalorder %s245, %s246
    %p255 = scmp.eq.s32.totalorder %s25, 0
    %p256 = por %p254, %p255
    %p257 = scmp.ne.s32.totalorder %s245, %s246
    %p258 = scmp.eq.s32.totalorder %s26, 1
    %p259 = por %p257, %p258
    %p261 = scmp.ne.s32.totalorder %s246, %s260
    %p262 = scmp.eq.s32.totalorder %s26, 0
    %p263 = por %p261, %p262
    %s265 = sadd.s32 %s264, 1
    %p268 = scmp.eq.s32.totalorder %s20, 1
    %p269 = scmp.ne.s32.totalorder %s264, %s266
    %p270 = scmp.eq.s32.totalorder %s20, 0
    %p271 = por %p269, %p270
    %p272 = scmp.ne.s32.totalorder %s264, %s266
    %p273 = scmp.eq.s32.totalorder %s25, 1
    %p274 = por %p272, %p273
    %p275 = scmp.ne.s32.totalorder %s266, %s267
    %p276 = scmp.eq.s32.totalorder %s25, 0
    %p277 = por %p275, %p276
    %p278 = scmp.ne.s32.totalorder %s266, %s267
    %p279 = scmp.eq.s32.totalorder %s26, 1
    %p280 = por %p278, %p279
    %p282 = scmp.ne.s32.totalorder %s267, %s281
    %p283 = scmp.eq.s32.totalorder %s26, 0
    %p284 = por %p282, %p283
    %s286 = sadd.s32 %s285, 1
    %p289 = scmp.eq.s32.totalorder %s20, 1
    %p290 = scmp.ne.s32.totalorder %s285, %s287
    %p291 = scmp.eq.s32.totalorder %s20, 0
    %p292 = por %p290, %p291
    %p293 = scmp.ne.s32.totalorder %s285, %s287
    %p294 = scmp.eq.s32.totalorder %s25, 1
    %p295 = por %p293, %p294
    %p296 = scmp.ne.s32.totalorder %s287, %s288
    %p297 = scmp.eq.s32.totalorder %s25, 0
    %p298 = por %p296, %p297
    %p299 = scmp.ne.s32.totalorder %s287, %s288
    %p300 = scmp.eq.s32.totalorder %s26, 1
    %p301 = por %p299, %p300
    %p303 = scmp.ne.s32.totalorder %s288, %s302
    %p304 = scmp.eq.s32.totalorder %s26, 0
    %p305 = por %p303, %p304
    %s307 = sadd.s32 %s306, 1
    %p310 = scmp.eq.s32.totalorder %s20, 1
    %p311 = scmp.ne.s32.totalorder %s306, %s308
    %p312 = scmp.eq.s32.totalorder %s20, 0
    %p313 = por %p311, %p312
    %p314 = scmp.ne.s32.totalorder %s306, %s308
    %p315 = scmp.eq.s32.totalorder %s25, 1
    %p316 = por %p314, %p315
    %p317 = scmp.ne.s32.totalorder %s308, %s309
    %p318 = scmp.eq.s32.totalorder %s25, 0
    %p319 = por %p317, %p318
    %p320 = scmp.ne.s32.totalorder %s308, %s309
    %p321 = scmp.eq.s32.totalorder %s26, 1
    %p322 = por %p320, %p321
    %p324 = scmp.ne.s32.totalorder %s309, %s323
    %p325 = scmp.eq.s32.totalorder %s26, 0
    %p326 = por %p324, %p325
    %s327 = ssub.s32 %s20, %s27
    %p328 = scmp.eq.s32.totalorder %s327, 0
    %s330 = sadd.s32 %s329, 1
    %s331 = scalar_select %p328, %s329, %s330
    %p334 = pneg %p328
    %p335 = scmp.eq.s32.totalorder %s20, 1
    %p336 = por %p334, %p335
    %p337 = scmp.ne.s32.totalorder %s329, %s332
    %p338 = scmp.eq.s32.totalorder %s20, 0
    %p339 = por %p337, %p338
    %p340 = scmp.ne.s32.totalorder %s329, %s332
    %p341 = scmp.eq.s32.totalorder %s25, 1
    %p342 = por %p340, %p341
    %p343 = scmp.ne.s32.totalorder %s332, %s333
    %p344 = scmp.eq.s32.totalorder %s25, 0
    %p345 = por %p343, %p344
    %p346 = scmp.ne.s32.totalorder %s332, %s333
    %p347 = scmp.eq.s32.totalorder %s26, 1
    %p348 = por %p346, %p347
    %p350 = scmp.ne.s32.totalorder %s333, %s349
    %p351 = scmp.eq.s32.totalorder %s26, 0
    %p352 = por %p350, %p351
    %p353 = scmp.le.s32.totalorder 1, %s20
    %p354 = scmp.lt.s32.totalorder %s20, 3
    %p355 = pnand %p353, %p354
    %p356 = pneg %p355
    // Predicated region
    $region9: #{tpu_custom_call.1} parent=5 // pred_check
      _
    $region10: #{tpu_custom_call.1} parent=5 // pred_check_branch
      %358 = sbr.rel (%p355) target = $region12
    $region11: #{tpu_custom_call.1} parent=5 // pred_region
      %s359 = ssub.s32 %s20, 1
      // Predicated region
      $region13: #{tpu_custom_call.1} parent=11 // pred_check
        %p360 = pneg %p67
      $region14: #{tpu_custom_call.1} parent=11 // pred_check_branch
        %362 = sbr.rel (%p360) target = $region16
      $region15: #{tpu_custom_call.1} parent=11 // pred_region
        _
      $region16: #{tpu_custom_call.1} parent=11 // pred_fallthru
        _
      // Predicated region
      $region17: #{tpu_custom_call.1} parent=11 // pred_check
        %p363 = pneg %p88
      $region18: #{tpu_custom_call.1} parent=11 // pred_check_branch
        %365 = sbr.rel (%p363) target = $region20
      $region19: #{tpu_custom_call.1} parent=11 // pred_region
        _
      $region20: #{tpu_custom_call.1} parent=11 // pred_fallthru
        _
      // Predicated region
      $region21: #{tpu_custom_call.1} parent=11 // pred_check
        %p366 = pneg %p109
      $region22: #{tpu_custom_call.1} parent=11 // pred_check_branch
        %368 = sbr.rel (%p366) target = $region24
      $region23: #{tpu_custom_call.1} parent=11 // pred_region
        _
      $region24: #{tpu_custom_call.1} parent=11 // pred_fallthru
        _
      // Predicated region
      $region25: #{tpu_custom_call.1} parent=11 // pred_check
        %p369 = pneg %p130
      $region26: #{tpu_custom_call.1} parent=11 // pred_check_branch
        %371 = sbr.rel (%p369) target = $region28
      $region27: #{tpu_custom_call.1} parent=11 // pred_region
        _
      $region28: #{tpu_custom_call.1} parent=11 // pred_fallthru
        _
      // Predicated region
      $region29: #{tpu_custom_call.1} parent=11 // pred_check
        %p372 = pneg %p151
      $region30: #{tpu_custom_call.1} parent=11 // pred_check_branch
        %374 = sbr.rel (%p372) target = $region32
      $region31: #{tpu_custom_call.1} parent=11 // pred_region
        _
      $region32: #{tpu_custom_call.1} parent=11 // pred_fallthru
        _
      // Predicated region
      $region33: #{tpu_custom_call.1} parent=11 // pred_check
        %p375 = pneg %p172
      $region34: #{tpu_custom_call.1} parent=11 // pred_check_branch
        %377 = sbr.rel (%p375) target = $region36
      $region35: #{tpu_custom_call.1} parent=11 // pred_region
        _
      $region36: #{tpu_custom_call.1} parent=11 // pred_fallthru
        _
      // Predicated region
      $region37: #{tpu_custom_call.1} parent=11 // pred_check
        %p378 = pneg %p193
      $region38: #{tpu_custom_call.1} parent=11 // pred_check_branch
        %380 = sbr.rel (%p378) target = $region40
      $region39: #{tpu_custom_call.1} parent=11 // pred_region
        _
      $region40: #{tpu_custom_call.1} parent=11 // pred_fallthru
        _
      // Predicated region
      $region41: #{tpu_custom_call.1} parent=11 // pred_check
        %p381 = pneg %p214
      $region42: #{tpu_custom_call.1} parent=11 // pred_check_branch
        %383 = sbr.rel (%p381) target = $region44
      $region43: #{tpu_custom_call.1} parent=11 // pred_region
        _
      $region44: #{tpu_custom_call.1} parent=11 // pred_fallthru
        _
      // Predicated region
      $region45: #{tpu_custom_call.1} parent=11 // pred_check
        %p384 = pneg %p235
      $region46: #{tpu_custom_call.1} parent=11 // pred_check_branch
        %386 = sbr.rel (%p384) target = $region48
      $region47: #{tpu_custom_call.1} parent=11 // pred_region
        _
      $region48: #{tpu_custom_call.1} parent=11 // pred_fallthru
        _
      // Predicated region
      $region49: #{tpu_custom_call.1} parent=11 // pred_check
        %p387 = pneg %p256
      $region50: #{tpu_custom_call.1} parent=11 // pred_check_branch
        %389 = sbr.rel (%p387) target = $region52
      $region51: #{tpu_custom_call.1} parent=11 // pred_region
        _
      $region52: #{tpu_custom_call.1} parent=11 // pred_fallthru
        _
      // Predicated region
      $region53: #{tpu_custom_call.1} parent=11 // pred_check
        %p390 = pneg %p277
      $region54: #{tpu_custom_call.1} parent=11 // pred_check_branch
        %392 = sbr.rel (%p390) target = $region56
      $region55: #{tpu_custom_call.1} parent=11 // pred_region
        _
      $region56: #{tpu_custom_call.1} parent=11 // pred_fallthru
        _
      // Predicated region
      $region57: #{tpu_custom_call.1} parent=11 // pred_check
        %p393 = pneg %p298
      $region58: #{tpu_custom_call.1} parent=11 // pred_check_branch
        %395 = sbr.rel (%p393) target = $region60
      $region59: #{tpu_custom_call.1} parent=11 // pred_region
        _
      $region60: #{tpu_custom_call.1} parent=11 // pred_fallthru
        _
      // Predicated region
      $region61: #{tpu_custom_call.1} parent=11 // pred_check
        %p396 = pneg %p319
      $region62: #{tpu_custom_call.1} parent=11 // pred_check_branch
        %398 = sbr.rel (%p396) target = $region64
      $region63: #{tpu_custom_call.1} parent=11 // pred_region
        _
      $region64: #{tpu_custom_call.1} parent=11 // pred_fallthru
        _
    $region12: #{tpu_custom_call.1} parent=5 // pred_fallthru
      _
    %p399 = scmp.lt.s32.totalorder %s20, 2
    // Predicated region
    $region65: #{tpu_custom_call.1} parent=5 // pred_check
      %p400 = pneg %p399
    $region66: #{tpu_custom_call.1} parent=5 // pred_check_branch
      %402 = sbr.rel (%p400) target = $region68
    $region67: #{tpu_custom_call.1} parent=5 // pred_region
      // Predicated region
      $region69: #{tpu_custom_call.1} parent=67 // pred_check
        %p403 = pneg %p40
      $region70: #{tpu_custom_call.1} parent=67 // pred_check_branch
        %405 = sbr.rel (%p403) target = $region72
      $region71: #{tpu_custom_call.1} parent=67 // pred_region
        %p406 = scmp.lt.s32.totalorder %s20, 1
        %s407 = scalar_select %p406, %s20, 1
        %s408 = smul.addr %s407, 8
        %s409 = smul.addr %s408, 8
        %s410 = scalar_lea.vmem %s0, %s409
      $region72: #{tpu_custom_call.1} parent=67 // pred_fallthru
        _
    $region68: #{tpu_custom_call.1} parent=5 // pred_fallthru
      _
    %p411 = scmp.le.s32.totalorder 1, %s20
    %p412 = scmp.lt.s32.totalorder %s20, 3
    %p413 = pnand %p411, %p412
    %p414 = pneg %p413
    // Predicated region
    $region73: #{tpu_custom_call.1} parent=5 // pred_check
      _
    $region74: #{tpu_custom_call.1} parent=5 // pred_check_branch
      %416 = sbr.rel (%p413) target = $region76
    $region75: #{tpu_custom_call.1} parent=5 // pred_region
      %s417 = ssub.s32 %s20, 1
      %p418 = scmp.lt.s32.totalorder %s25, 1
      %s419 = scalar_select %p418, %s25, 1
      %s420 = smul.addr %s419, 8
      %s421 = smul.addr %s420, 8
      %s422 = scalar_lea.vmem %s0, %s421
      %p423 = pneg %p46
      %p424 = pneg %p43
      %p425 = pneg %p67
      %p426 = pneg %p64
      %p427 = pneg %p88
      %p428 = pneg %p85
      %p429 = pneg %p109
      %p430 = pneg %p106
      %p431 = pneg %p130
      %p432 = pneg %p127
      %p433 = pneg %p151
      %p434 = pneg %p148
      %p435 = pneg %p172
      %p436 = pneg %p169
      %p437 = pneg %p193
      %p438 = pneg %p190
      %p439 = pneg %p214
      %p440 = pneg %p211
      %p441 = pneg %p235
      %p442 = pneg %p232
      %p443 = pneg %p256
      %p444 = pneg %p253
      %p445 = pneg %p277
      %p446 = pneg %p274
      %p447 = pneg %p298
      %p448 = pneg %p295
      %p449 = pneg %p319
      %p450 = pneg %p316
      %p451 = pneg %p345
      %p452 = pneg %p342
      %p453 = scmp.lt.s32.totalorder %s25, 1
      %s454 = scalar_select %p453, %s25, 1
      %s455 = smul.addr %s454, 8
      %s456 = smul.addr %s455, 8
      %s457 = scalar_lea.vmem %s14, %s456
      %p458 = scmp.lt.s32.totalorder %s25, 1
      %s459 = scalar_select %p458, %s25, 1
      %s460 = smul.addr %s459, 8
      %s461 = smul.addr %s460, 8
      %s462 = scalar_lea.vmem %s0, %s461
      %p463 = scmp.lt.s32.totalorder %s25, 1
      %s464 = scalar_select %p463, %s25, 1
      %s465 = smul.addr %s464, 8
      %s466 = smul.addr %s465, 8
      %s467 = scalar_lea.vmem %s14, %s466
      %v468 = vld [vmem:[%s462] sm:$0xff]
      %v469 = vld [vmem:[%s462 + $0x8] sm:$0xff]
      %v470 = vld [vmem:[%s462 + $0x10] sm:$0xff]
      %v471 = vld [vmem:[%s462 + $0x18] sm:$0xff]
      %v472 = vld [vmem:[%s462 + $0x20] sm:$0xff]
      %v473 = vld [vmem:[%s462 + $0x28] sm:$0xff]
      %v474 = vld [vmem:[%s462 + $0x30] sm:$0xff]
      %v475 = vld [vmem:[%s462 + $0x38] sm:$0xff]
      %vm476 = vcmask 130048
      %477 = vst.msk [vmem:[#allocation2] sm:$0xff] %vm476, 0.0
      %478 = vst.msk [vmem:[#allocation2 + $0x8] sm:$0xff] %vm476, 0.0
      %479 = vst.msk [vmem:[#allocation2 + $0x10] sm:$0xff] %vm476, 0.0
      %480 = vst.msk [vmem:[#allocation2 + $0x18] sm:$0xff] %vm476, 0.0
      %481 = vst.msk [vmem:[#allocation2 + $0x20] sm:$0xff] %vm476, 0.0
      %482 = vst.msk [vmem:[#allocation2 + $0x28] sm:$0xff] %vm476, 0.0
      %483 = vst.msk [vmem:[#allocation2 + $0x30] sm:$0xff] %vm476, 0.0
      %484 = vst.msk [vmem:[#allocation2 + $0x38] sm:$0xff] %vm476, 0.0
      %485 = vst.msk [vmem:[#allocation2 + $0x40] sm:$0xff] %vm476, 0.0
      %486 = vst.msk [vmem:[#allocation2 + $0x48] sm:$0xff] %vm476, 0.0
      %487 = vst.msk [vmem:[#allocation2 + $0x50] sm:$0xff] %vm476, 0.0
      %488 = vst.msk [vmem:[#allocation2 + $0x58] sm:$0xff] %vm476, 0.0
      %489 = vst.msk [vmem:[#allocation2 + $0x10] sm:$0xff] %vm476, %v468
      %490 = vst.msk [vmem:[#allocation2 + $0x18] sm:$0xff] %vm476, %v469
      %491 = vst.msk [vmem:[#allocation2 + $0x20] sm:$0xff] %vm476, %v470
      %492 = vst.msk [vmem:[#allocation2 + $0x28] sm:$0xff] %vm476, %v471
      %493 = vst.msk [vmem:[#allocation2 + $0x30] sm:$0xff] %vm476, %v472
      %494 = vst.msk [vmem:[#allocation2 + $0x38] sm:$0xff] %vm476, %v473
      %495 = vst.msk [vmem:[#allocation2 + $0x40] sm:$0xff] %vm476, %v474
      %496 = vst.msk [vmem:[#allocation2 + $0x48] sm:$0xff] %vm476, %v475
      %v497 = vlaneseq
      %v498 = vshrl.u32 %v497, 7
      %v499 = vadd.s32 %v498, 8
      %v500 = vadd.s32 %v498, 16
      %v501 = vadd.s32 %v498, 24
      %v502 = vadd.s32 %v498, 32
      %v503 = vadd.s32 %v498, 40
      %v504 = vadd.s32 %v498, 48
      %v505 = vadd.s32 %v498, 56
      %vm506 = vcmp.lt.s32.totalorder %v498, 0
      %v507 = vsub.s32 0, %v498
      %v508 = vsel %vm506, %v507, %v498
      %v509 = vshrl.u32 %v508, 3
      %v510 = vand.u32 %v508, 7
      %v511 = vsub.s32 0, %v510
      %v512 = vsel %vm506, %v511, %v510
      %vm513 = vcmp.lt.s32.totalorder %v499, 0
      %v514 = vsub.s32 0, %v499
      %v515 = vsel %vm513, %v514, %v499
      %v516 = vshrl.u32 %v515, 3
      %v517 = vand.u32 %v515, 7
      %v518 = vsub.s32 0, %v517
      %v519 = vsel %vm513, %v518, %v517
      %vm520 = vcmp.lt.s32.totalorder %v500, 0
      %v521 = vsub.s32 0, %v500
      %v522 = vsel %vm520, %v521, %v500
      %v523 = vshrl.u32 %v522, 3
      %v524 = vand.u32 %v522, 7
      %v525 = vsub.s32 0, %v524
      %v526 = vsel %vm520, %v525, %v524
      %vm527 = vcmp.lt.s32.totalorder %v501, 0
      %v528 = vsub.s32 0, %v501
      %v529 = vsel %vm527, %v528, %v501
      %v530 = vshrl.u32 %v529, 3
      %v531 = vand.u32 %v529, 7
      %v532 = vsub.s32 0, %v531
      %v533 = vsel %vm527, %v532, %v531
      %vm534 = vcmp.lt.s32.totalorder %v502, 0
      %v535 = vsub.s32 0, %v502
      %v536 = vsel %vm534, %v535, %v502
      %v537 = vshrl.u32 %v536, 3
      %v538 = vand.u32 %v536, 7
      %v539 = vsub.s32 0, %v538
      %v540 = vsel %vm534, %v539, %v538
      %vm541 = vcmp.lt.s32.totalorder %v503, 0
      %v542 = vsub.s32 0, %v503
      %v543 = vsel %vm541, %v542, %v503
      %v544 = vshrl.u32 %v543, 3
      %v545 = vand.u32 %v543, 7
      %v546 = vsub.s32 0, %v545
      %v547 = vsel %vm541, %v546, %v545
      %vm548 = vcmp.lt.s32.totalorder %v504, 0
      %v549 = vsub.s32 0, %v504
      %v550 = vsel %vm548, %v549, %v504
      %v551 = vshrl.u32 %v550, 3
      %v552 = vand.u32 %v550, 7
      %v553 = vsub.s32 0, %v552
      %v554 = vsel %vm548, %v553, %v552
      %vm555 = vcmp.lt.s32.totalorder %v505, 0
      %v556 = vsub.s32 0, %v505
      %v557 = vsel %vm555, %v556, %v505
      %v558 = vshrl.u32 %v557, 3
      %v559 = vand.u32 %v557, 7
      %v560 = vsub.s32 0, %v559
      %v561 = vsel %vm555, %v560, %v559
      %vm562 = vcmp.ne.s32.totalorder %v512, 0
      %vm563 = vcmp.ne.s32.totalorder %v519, 0
      %vm564 = vcmp.ne.s32.totalorder %v526, 0
      %vm565 = vcmp.ne.s32.totalorder %v533, 0
      %vm566 = vcmp.ne.s32.totalorder %v540, 0
      %vm567 = vcmp.ne.s32.totalorder %v547, 0
      %vm568 = vcmp.ne.s32.totalorder %v554, 0
      %vm569 = vcmp.ne.s32.totalorder %v561, 0
      %vm570 = vcmp.lt.s32.totalorder %v512, 0
      %vm571 = vcmp.lt.s32.totalorder %v519, 0
      %vm572 = vcmp.lt.s32.totalorder %v526, 0
      %vm573 = vcmp.lt.s32.totalorder %v533, 0
      %vm574 = vcmp.lt.s32.totalorder %v540, 0
      %vm575 = vcmp.lt.s32.totalorder %v547, 0
      %vm576 = vcmp.lt.s32.totalorder %v554, 0
      %vm577 = vcmp.lt.s32.totalorder %v561, 0
      %vm578 = vmand %vm570, %vm562
      %vm579 = vmand %vm571, %vm563
      %vm580 = vmand %vm572, %vm564
      %vm581 = vmand %vm573, %vm565
      %vm582 = vmand %vm574, %vm566
      %vm583 = vmand %vm575, %vm567
      %vm584 = vmand %vm576, %vm568
      %vm585 = vmand %vm577, %vm569
      %v586 = vadd.s32 %v512, 8
      %v587 = vadd.s32 %v519, 8
      %v588 = vadd.s32 %v526, 8
      %v589 = vadd.s32 %v533, 8
      %v590 = vadd.s32 %v540, 8
      %v591 = vadd.s32 %v547, 8
      %v592 = vadd.s32 %v554, 8
      %v593 = vadd.s32 %v561, 8
      %v594 = vsel %vm578, %v586, %v512
      %v595 = vsel %vm579, %v587, %v519
      %v596 = vsel %vm580, %v588, %v526
      %v597 = vsel %vm581, %v589, %v533
      %v598 = vsel %vm582, %v590, %v540
      %v599 = vsel %vm583, %v591, %v547
      %v600 = vsel %vm584, %v592, %v554
      %v601 = vsel %vm585, %v593, %v561
      %v602 = vld [vmem:[%s1] sm:$0x1]
      %v603 = vld [vmem:[#allocation2 + $0x7] sm:$0xff]
      %v604 = vld [vmem:[#allocation2 + $0xf] sm:$0xff]
      %v605 = vld [vmem:[#allocation2 + $0x17] sm:$0xff]
      %v606 = vld [vmem:[#allocation2 + $0x1f] sm:$0xff]
      %v607 = vld [vmem:[#allocation2 + $0x27] sm:$0xff]
      %v608 = vld [vmem:[#allocation2 + $0x2f] sm:$0xff]
      %v609 = vld [vmem:[#allocation2 + $0x37] sm:$0xff]
      %v610 = vld [vmem:[#allocation2 + $0x3f] sm:$0xff]
      %vm611 = vcmp.gt.s32.totalorder %v594, 0
      %vm612 = vcmp.gt.s32.totalorder %v595, 0
      %vm613 = vcmp.gt.s32.totalorder %v596, 0
      %vm614 = vcmp.gt.s32.totalorder %v597, 0
      %vm615 = vcmp.gt.s32.totalorder %v598, 0
      %vm616 = vcmp.gt.s32.totalorder %v599, 0
      %vm617 = vcmp.gt.s32.totalorder %v600, 0
      %vm618 = vcmp.gt.s32.totalorder %v601, 0
      %v619 = vsel %vm611, %v603, 0.0
      %v620 = vsel %vm612, %v604, 0.0
      %v621 = vsel %vm613, %v605, 0.0
      %v622 = vsel %vm614, %v606, 0.0
      %v623 = vsel %vm615, %v607, 0.0
      %v624 = vsel %vm616, %v608, 0.0
      %v625 = vsel %vm617, %v609, 0.0
      %v626 = vsel %vm618, %v610, 0.0
      %v627 = vperm.slane %v602, 0
      %v628 = vmul.f32 %v619, %v627
      %v629 = vmul.f32 %v620, %v627
      %v630 = vmul.f32 %v621, %v627
      %v631 = vmul.f32 %v622, %v627
      %v632 = vmul.f32 %v623, %v627
      %v633 = vmul.f32 %v624, %v627
      %v634 = vmul.f32 %v625, %v627
      %v635 = vmul.f32 %v626, %v627
      %v636 = vadd.f32 %v628, 0.0
      %v637 = vadd.f32 %v629, 0.0
      %v638 = vadd.f32 %v630, 0.0
      %v639 = vadd.f32 %v631, 0.0
      %v640 = vadd.f32 %v632, 0.0
      %v641 = vadd.f32 %v633, 0.0
      %v642 = vadd.f32 %v634, 0.0
      %v643 = vadd.f32 %v635, 0.0
      %v644 = vld [vmem:[%s1 + $0x1] sm:$0x1]
      %v645 = vld [vmem:[#allocation2 + $0x8] sm:$0xff]
      %v646 = vld [vmem:[#allocation2 + $0x10] sm:$0xff]
      %v647 = vld [vmem:[#allocation2 + $0x18] sm:$0xff]
      %v648 = vld [vmem:[#allocation2 + $0x20] sm:$0xff]
      %v649 = vld [vmem:[#allocation2 + $0x28] sm:$0xff]
      %v650 = vld [vmem:[#allocation2 + $0x30] sm:$0xff]
      %v651 = vld [vmem:[#allocation2 + $0x38] sm:$0xff]
      %v652 = vld [vmem:[#allocation2 + $0x40] sm:$0xff]
      %v653 = vperm.slane %v644, 0
      %v654 = vmul.f32 %v645, %v653
      %v655 = vmul.f32 %v646, %v653
      %v656 = vmul.f32 %v647, %v653
      %v657 = vmul.f32 %v648, %v653
      %v658 = vmul.f32 %v649, %v653
      %v659 = vmul.f32 %v650, %v653
      %v660 = vmul.f32 %v651, %v653
      %v661 = vmul.f32 %v652, %v653
      %v662 = vadd.f32 %v636, %v654
      %v663 = vadd.f32 %v637, %v655
      %v664 = vadd.f32 %v638, %v656
      %v665 = vadd.f32 %v639, %v657
      %v666 = vadd.f32 %v640, %v658
      %v667 = vadd.f32 %v641, %v659
      %v668 = vadd.f32 %v642, %v660
      %v669 = vadd.f32 %v643, %v661
      %v670 = vld [vmem:[%s1 + $0x2] sm:$0x1]
      %v671 = vld [vmem:[#allocation2 + $0x9] sm:$0xff]
      %v672 = vld [vmem:[#allocation2 + $0x11] sm:$0xff]
      %v673 = vld [vmem:[#allocation2 + $0x19] sm:$0xff]
      %v674 = vld [vmem:[#allocation2 + $0x21] sm:$0xff]
      %v675 = vld [vmem:[#allocation2 + $0x29] sm:$0xff]
      %v676 = vld [vmem:[#allocation2 + $0x31] sm:$0xff]
      %v677 = vld [vmem:[#allocation2 + $0x39] sm:$0xff]
      %v678 = vld [vmem:[#allocation2 + $0x41] sm:$0xff]
      %vm679 = vcmp.lt.s32.totalorder %v594, 7
      %vm680 = vcmp.lt.s32.totalorder %v595, 7
      %vm681 = vcmp.lt.s32.totalorder %v596, 7
      %vm682 = vcmp.lt.s32.totalorder %v597, 7
      %vm683 = vcmp.lt.s32.totalorder %v598, 7
      %vm684 = vcmp.lt.s32.totalorder %v599, 7
      %vm685 = vcmp.lt.s32.totalorder %v600, 7
      %vm686 = vcmp.lt.s32.totalorder %v601, 7
      %v687 = vsel %vm679, %v671, 0.0
      %v688 = vsel %vm680, %v672, 0.0
      %v689 = vsel %vm681, %v673, 0.0
      %v690 = vsel %vm682, %v674, 0.0
      %v691 = vsel %vm683, %v675, 0.0
      %v692 = vsel %vm684, %v676, 0.0
      %v693 = vsel %vm685, %v677, 0.0
      %v694 = vsel %vm686, %v678, 0.0
      %v695 = vperm.slane %v670, 0
      %v696 = vmul.f32 %v687, %v695
      %v697 = vmul.f32 %v688, %v695
      %v698 = vmul.f32 %v689, %v695
      %v699 = vmul.f32 %v690, %v695
      %v700 = vmul.f32 %v691, %v695
      %v701 = vmul.f32 %v692, %v695
      %v702 = vmul.f32 %v693, %v695
      %v703 = vmul.f32 %v694, %v695
      %v704 = vadd.f32 %v662, %v696
      %v705 = vadd.f32 %v663, %v697
      %v706 = vadd.f32 %v664, %v698
      %v707 = vadd.f32 %v665, %v699
      %v708 = vadd.f32 %v666, %v700
      %v709 = vadd.f32 %v667, %v701
      %v710 = vadd.f32 %v668, %v702
      %v711 = vadd.f32 %v669, %v703
      %v712 = vld [vmem:[%s1 + $0x3] sm:$0x1]
      %v713 = vld [vmem:[#allocation2 + $0x47] sm:$0xff]
      %v714 = vsel %vm611, %v604, 0.0
      %v715 = vsel %vm612, %v605, 0.0
      %v716 = vsel %vm613, %v606, 0.0
      %v717 = vsel %vm614, %v607, 0.0
      %v718 = vsel %vm615, %v608, 0.0
      %v719 = vsel %vm616, %v609, 0.0
      %v720 = vsel %vm617, %v610, 0.0
      %v721 = vsel %vm618, %v713, 0.0
      %v722 = vperm.slane %v712, 0
      %v723 = vmul.f32 %v714, %v722
      %v724 = vmul.f32 %v715, %v722
      %v725 = vmul.f32 %v716, %v722
      %v726 = vmul.f32 %v717, %v722
      %v727 = vmul.f32 %v718, %v722
      %v728 = vmul.f32 %v719, %v722
      %v729 = vmul.f32 %v720, %v722
      %v730 = vmul.f32 %v721, %v722
      %v731 = vadd.f32 %v704, %v723
      %v732 = vadd.f32 %v705, %v724
      %v733 = vadd.f32 %v706, %v725
      %v734 = vadd.f32 %v707, %v726
      %v735 = vadd.f32 %v708, %v727
      %v736 = vadd.f32 %v709, %v728
      %v737 = vadd.f32 %v710, %v729
      %v738 = vadd.f32 %v711, %v730
      %v739 = vld [vmem:[%s1 + $0x4] sm:$0x1]
      %v740 = vld [vmem:[#allocation2 + $0x48] sm:$0xff]
      %v741 = vperm.slane %v739, 0
      %v742 = vmul.f32 %v646, %v741
      %v743 = vmul.f32 %v647, %v741
      %v744 = vmul.f32 %v648, %v741
      %v745 = vmul.f32 %v649, %v741
      %v746 = vmul.f32 %v650, %v741
      %v747 = vmul.f32 %v651, %v741
      %v748 = vmul.f32 %v652, %v741
      %v749 = vmul.f32 %v740, %v741
      %v750 = vadd.f32 %v731, %v742
      %v751 = vadd.f32 %v732, %v743
      %v752 = vadd.f32 %v733, %v744
      %v753 = vadd.f32 %v734, %v745
      %v754 = vadd.f32 %v735, %v746
      %v755 = vadd.f32 %v736, %v747
      %v756 = vadd.f32 %v737, %v748
      %v757 = vadd.f32 %v738, %v749
      %v758 = vld [vmem:[%s1 + $0x5] sm:$0x1]
      %v759 = vld [vmem:[#allocation2 + $0x49] sm:$0xff]
      %v760 = vsel %vm679, %v672, 0.0
      %v761 = vsel %vm680, %v673, 0.0
      %v762 = vsel %vm681, %v674, 0.0
      %v763 = vsel %vm682, %v675, 0.0
      %v764 = vsel %vm683, %v676, 0.0
      %v765 = vsel %vm684, %v677, 0.0
      %v766 = vsel %vm685, %v678, 0.0
      %v767 = vsel %vm686, %v759, 0.0
      %v768 = vperm.slane %v758, 0
      %v769 = vmul.f32 %v760, %v768
      %v770 = vmul.f32 %v761, %v768
      %v771 = vmul.f32 %v762, %v768
      %v772 = vmul.f32 %v763, %v768
      %v773 = vmul.f32 %v764, %v768
      %v774 = vmul.f32 %v765, %v768
      %v775 = vmul.f32 %v766, %v768
      %v776 = vmul.f32 %v767, %v768
      %v777 = vadd.f32 %v750, %v769
      %v778 = vadd.f32 %v751, %v770
      %v779 = vadd.f32 %v752, %v771
      %v780 = vadd.f32 %v753, %v772
      %v781 = vadd.f32 %v754, %v773
      %v782 = vadd.f32 %v755, %v774
      %v783 = vadd.f32 %v756, %v775
      %v784 = vadd.f32 %v757, %v776
      %v785 = vld [vmem:[%s1 + $0x6] sm:$0x1]
      %v786 = vld [vmem:[#allocation2 + $0x4f] sm:$0xff]
      %v787 = vsel %vm611, %v605, 0.0
      %v788 = vsel %vm612, %v606, 0.0
      %v789 = vsel %vm613, %v607, 0.0
      %v790 = vsel %vm614, %v608, 0.0
      %v791 = vsel %vm615, %v609, 0.0
      %v792 = vsel %vm616, %v610, 0.0
      %v793 = vsel %vm617, %v713, 0.0
      %v794 = vsel %vm618, %v786, 0.0
      %v795 = vperm.slane %v785, 0
      %v796 = vmul.f32 %v787, %v795
      %v797 = vmul.f32 %v788, %v795
      %v798 = vmul.f32 %v789, %v795
      %v799 = vmul.f32 %v790, %v795
      %v800 = vmul.f32 %v791, %v795
      %v801 = vmul.f32 %v792, %v795
      %v802 = vmul.f32 %v793, %v795
      %v803 = vmul.f32 %v794, %v795
      %v804 = vadd.f32 %v777, %v796
      %v805 = vadd.f32 %v778, %v797
      %v806 = vadd.f32 %v779, %v798
      %v807 = vadd.f32 %v780, %v799
      %v808 = vadd.f32 %v781, %v800
      %v809 = vadd.f32 %v782, %v801
      %v810 = vadd.f32 %v783, %v802
      %v811 = vadd.f32 %v784, %v803
      %v812 = vld [vmem:[%s1 + $0x7] sm:$0x1]
      %v813 = vld [vmem:[#allocation2 + $0x50] sm:$0xff]
      %v814 = vperm.slane %v812, 0
      %v815 = vmul.f32 %v647, %v814
      %v816 = vmul.f32 %v648, %v814
      %v817 = vmul.f32 %v649, %v814
      %v818 = vmul.f32 %v650, %v814
      %v819 = vmul.f32 %v651, %v814
      %v820 = vmul.f32 %v652, %v814
      %v821 = vmul.f32 %v740, %v814
      %v822 = vmul.f32 %v813, %v814
      %v823 = vadd.f32 %v804, %v815
      %v824 = vadd.f32 %v805, %v816
      %v825 = vadd.f32 %v806, %v817
      %v826 = vadd.f32 %v807, %v818
      %v827 = vadd.f32 %v808, %v819
      %v828 = vadd.f32 %v809, %v820
      %v829 = vadd.f32 %v810, %v821
      %v830 = vadd.f32 %v811, %v822
      %v831 = vld [vmem:[%s1 + $0x8] sm:$0x1]
      %v832 = vld [vmem:[#allocation2 + $0x51] sm:$0xff]
      %v833 = vsel %vm679, %v673, 0.0
      %v834 = vsel %vm680, %v674, 0.0
      %v835 = vsel %vm681, %v675, 0.0
      %v836 = vsel %vm682, %v676, 0.0
      %v837 = vsel %vm683, %v677, 0.0
      %v838 = vsel %vm684, %v678, 0.0
      %v839 = vsel %vm685, %v759, 0.0
      %v840 = vsel %vm686, %v832, 0.0
      %v841 = vperm.slane %v831, 0
      %v842 = vmul.f32 %v833, %v841
      %v843 = vmul.f32 %v834, %v841
      %v844 = vmul.f32 %v835, %v841
      %v845 = vmul.f32 %v836, %v841
      %v846 = vmul.f32 %v837, %v841
      %v847 = vmul.f32 %v838, %v841
      %v848 = vmul.f32 %v839, %v841
      %v849 = vmul.f32 %v840, %v841
      %v850 = vadd.f32 %v823, %v842
      %v851 = vadd.f32 %v824, %v843
      %v852 = vadd.f32 %v825, %v844
      %v853 = vadd.f32 %v826, %v845
      %v854 = vadd.f32 %v827, %v846
      %v855 = vadd.f32 %v828, %v847
      %v856 = vadd.f32 %v829, %v848
      %v857 = vadd.f32 %v830, %v849
      %v858 = vld [vmem:[%s2] sm:$0x1]
      %v860 = vperm.slane %v858, 0
      %v862 = vmul.f32 %v850, %v860
      %v863 = vmul.f32 %v851, %v860
      %v864 = vmul.f32 %v852, %v860
      %v865 = vmul.f32 %v853, %v860
      %v866 = vmul.f32 %v854, %v860
      %v867 = vmul.f32 %v855, %v860
      %v868 = vmul.f32 %v856, %v860
      %v869 = vmul.f32 %v857, %v860
      %v870 = vld [vmem:[%s3] sm:$0x1]
      %v872 = vperm.slane %v870, 0
      %v874 = vadd.f32 %v862, %v872
      %v875 = vadd.f32 %v863, %v872
      %v876 = vadd.f32 %v864, %v872
      %v877 = vadd.f32 %v865, %v872
      %v878 = vadd.f32 %v866, %v872
      %v879 = vadd.f32 %v867, %v872
      %v880 = vadd.f32 %v868, %v872
      %v881 = vadd.f32 %v869, %v872
      %v882 = vld [vmem:[%s4] sm:$0xff]
      %v883 = vld [vmem:[%s4 + $0x8] sm:$0xff]
      %v885 = vsel %vm476, %v468, 0
      %v888 = vsel %vm476, %v469, 0
      %v891 = vsel %vm476, %v470, 0
      %v894 = vsel %vm476, %v471, 0
      %v897 = vsel %vm476, %v472, 0
      %v900 = vsel %vm476, %v473, 0
      %v903 = vsel %vm476, %v474, 0
      %v906 = vsel %vm476, %v475, 0
      %908 = vmatpush.msra.mxu0 0.0
      %909 = vmatpush.msra.mxu0 0.0
      %910 = vmatpush.msra.mxu0 0.0
      %911 = vmatpush.msra.mxu0 0.0
      %912 = vmatpush.msra.mxu0 0.0
      %913 = vmatpush.msra.mxu0 0.0
      %914 = vmatpush.msra.mxu0 0.0
      %915 = vmatpush.msra.mxu0 0.0
      %916 = vmatpush.msra.mxu0 0.0
      %917 = vmatpush.msra.mxu0 0.0
      %918 = vmatpush.msra.mxu0 0.0
      %919 = vmatpush.msra.mxu0 0.0
      %920 = vmatpush.msra.mxu0 0.0
      %921 = vmatpush.msra.mxu0 0.0
      %922 = vmatpush.msra.mxu0 %v883
      %923 = vmatpush.msra.mxu0 %v882
      %924 = vmatmul.f32.gmra.mxu0 %v885
      %v925 = vpop.f32.mrf.mxu0
      %v926 = vadd.f32 0.0, %v925
      %927 = vmatmul.f32.gmra.mxu0 %v888
      %v928 = vpop.f32.mrf.mxu0
      %v929 = vadd.f32 0.0, %v928
      %930 = vmatmul.f32.gmra.mxu0 %v891
      %v931 = vpop.f32.mrf.mxu0
      %v932 = vadd.f32 0.0, %v931
      %933 = vmatmul.f32.gmra.mxu0 %v894
      %v934 = vpop.f32.mrf.mxu0
      %v935 = vadd.f32 0.0, %v934
      %936 = vmatmul.f32.gmra.mxu0 %v897
      %v937 = vpop.f32.mrf.mxu0
      %v938 = vadd.f32 0.0, %v937
      %939 = vmatmul.f32.gmra.mxu0 %v900
      %v940 = vpop.f32.mrf.mxu0
      %v941 = vadd.f32 0.0, %v940
      %942 = vmatmul.f32.gmra.mxu0 %v903
      %v943 = vpop.f32.mrf.mxu0
      %v944 = vadd.f32 0.0, %v943
      %945 = vmatmul.f32.gmra.mxu0 %v906
      %v946 = vpop.f32.mrf.mxu0
      %v947 = vadd.f32 0.0, %v946
      %948 = vdwg.mxu0
      %v949 = vld [vmem:[%s5] sm:$0x1]
      %v951 = vperm.slane %v949, 0
      %v953 = vmul.f32 %v926, %v951
      %v954 = vmul.f32 %v929, %v951
      %v955 = vmul.f32 %v932, %v951
      %v956 = vmul.f32 %v935, %v951
      %v957 = vmul.f32 %v938, %v951
      %v958 = vmul.f32 %v941, %v951
      %v959 = vmul.f32 %v944, %v951
      %v960 = vmul.f32 %v947, %v951
      %v961 = vld [vmem:[%s6] sm:$0x1]
      %v963 = vperm.slane %v961, 0
      %v965 = vadd.f32 %v953, %v963
      %v966 = vadd.f32 %v954, %v963
      %v967 = vadd.f32 %v955, %v963
      %v968 = vadd.f32 %v956, %v963
      %v969 = vadd.f32 %v957, %v963
      %v970 = vadd.f32 %v958, %v963
      %v971 = vadd.f32 %v959, %v963
      %v972 = vadd.f32 %v960, %v963
      %v973 = vmax.f32 %v965, 0.0
      %v974 = vmax.f32 %v966, 0.0
      %v975 = vmax.f32 %v967, 0.0
      %v976 = vmax.f32 %v968, 0.0
      %v977 = vmax.f32 %v969, 0.0
      %v978 = vmax.f32 %v970, 0.0
      %v979 = vmax.f32 %v971, 0.0
      %v980 = vmax.f32 %v972, 0.0
      %vm981 = vcmask 31744
      %982 = vst.msk [vmem:[#allocation3] sm:$0xff] %vm981, 0.0
      %983 = vst.msk [vmem:[#allocation3 + $0x8] sm:$0xff] %vm981, 0.0
      %984 = vst.msk [vmem:[#allocation3 + $0x10] sm:$0xff] %vm981, 0.0
      %985 = vst.msk [vmem:[#allocation3 + $0x18] sm:$0xff] %vm981, 0.0
      %986 = vst.msk [vmem:[#allocation3 + $0x20] sm:$0xff] %vm981, 0.0
      %987 = vst.msk [vmem:[#allocation3 + $0x28] sm:$0xff] %vm981, 0.0
      %988 = vst.msk [vmem:[#allocation3 + $0x30] sm:$0xff] %vm981, 0.0
      %989 = vst.msk [vmem:[#allocation3 + $0x38] sm:$0xff] %vm981, 0.0
      %990 = vst.msk [vmem:[#allocation3 + $0x40] sm:$0xff] %vm981, 0.0
      %991 = vst.msk [vmem:[#allocation3 + $0x48] sm:$0xff] %vm981, 0.0
      %992 = vst.msk [vmem:[#allocation3 + $0x50] sm:$0xff] %vm981, 0.0
      %993 = vst.msk [vmem:[#allocation3 + $0x58] sm:$0xff] %vm981, 0.0
      %994 = vst.msk [vmem:[#allocation3 + $0x10] sm:$0xff] %vm981, %v973
      %995 = vst.msk [vmem:[#allocation3 + $0x18] sm:$0xff] %vm981, %v974
      %996 = vst.msk [vmem:[#allocation3 + $0x20] sm:$0xff] %vm981, %v975
      %997 = vst.msk [vmem:[#allocation3 + $0x28] sm:$0xff] %vm981, %v976
      %998 = vst.msk [vmem:[#allocation3 + $0x30] sm:$0xff] %vm981, %v977
      %999 = vst.msk [vmem:[#allocation3 + $0x38] sm:$0xff] %vm981, %v978
      %1000 = vst.msk [vmem:[#allocation3 + $0x40] sm:$0xff] %vm981, %v979
      %1001 = vst.msk [vmem:[#allocation3 + $0x48] sm:$0xff] %vm981, %v980
      %v1002 = vld [vmem:[%s7] sm:$0x1]
      %v1003 = vld [vmem:[#allocation3 + $0x7] sm:$0xff]
      %v1004 = vld [vmem:[#allocation3 + $0xf] sm:$0xff]
      %v1005 = vld [vmem:[#allocation3 + $0x17] sm:$0xff]
      %v1006 = vld [vmem:[#allocation3 + $0x1f] sm:$0xff]
      %v1007 = vld [vmem:[#allocation3 + $0x27] sm:$0xff]
      %v1008 = vld [vmem:[#allocation3 + $0x2f] sm:$0xff]
      %v1009 = vld [vmem:[#allocation3 + $0x37] sm:$0xff]
      %v1010 = vld [vmem:[#allocation3 + $0x3f] sm:$0xff]
      %v1011 = vsel %vm611, %v1003, 0.0
      %v1012 = vsel %vm612, %v1004, 0.0
      %v1013 = vsel %vm613, %v1005, 0.0
      %v1014 = vsel %vm614, %v1006, 0.0
      %v1015 = vsel %vm615, %v1007, 0.0
      %v1016 = vsel %vm616, %v1008, 0.0
      %v1017 = vsel %vm617, %v1009, 0.0
      %v1018 = vsel %vm618, %v1010, 0.0
      %v1019 = vperm.slane %v1002, 0
      %v1020 = vmul.f32 %v1011, %v1019
      %v1021 = vmul.f32 %v1012, %v1019
      %v1022 = vmul.f32 %v1013, %v1019
      %v1023 = vmul.f32 %v1014, %v1019
      %v1024 = vmul.f32 %v1015, %v1019
      %v1025 = vmul.f32 %v1016, %v1019
      %v1026 = vmul.f32 %v1017, %v1019
      %v1027 = vmul.f32 %v1018, %v1019
      %v1028 = vadd.f32 %v1020, 0.0
      %v1029 = vadd.f32 %v1021, 0.0
      %v1030 = vadd.f32 %v1022, 0.0
      %v1031 = vadd.f32 %v1023, 0.0
      %v1032 = vadd.f32 %v1024, 0.0
      %v1033 = vadd.f32 %v1025, 0.0
      %v1034 = vadd.f32 %v1026, 0.0
      %v1035 = vadd.f32 %v1027, 0.0
      %v1036 = vld [vmem:[%s7 + $0x1] sm:$0x1]
      %v1037 = vld [vmem:[#allocation3 + $0x8] sm:$0xff]
      %v1038 = vld [vmem:[#allocation3 + $0x10] sm:$0xff]
      %v1039 = vld [vmem:[#allocation3 + $0x18] sm:$0xff]
      %v1040 = vld [vmem:[#allocation3 + $0x20] sm:$0xff]
      %v1041 = vld [vmem:[#allocation3 + $0x28] sm:$0xff]
      %v1042 = vld [vmem:[#allocation3 + $0x30] sm:$0xff]
      %v1043 = vld [vmem:[#allocation3 + $0x38] sm:$0xff]
      %v1044 = vld [vmem:[#allocation3 + $0x40] sm:$0xff]
      %v1045 = vperm.slane %v1036, 0
      %v1046 = vmul.f32 %v1037, %v1045
      %v1047 = vmul.f32 %v1038, %v1045
      %v1048 = vmul.f32 %v1039, %v1045
      %v1049 = vmul.f32 %v1040, %v1045
      %v1050 = vmul.f32 %v1041, %v1045
      %v1051 = vmul.f32 %v1042, %v1045
      %v1052 = vmul.f32 %v1043, %v1045
      %v1053 = vmul.f32 %v1044, %v1045
      %v1054 = vadd.f32 %v1028, %v1046
      %v1055 = vadd.f32 %v1029, %v1047
      %v1056 = vadd.f32 %v1030, %v1048
      %v1057 = vadd.f32 %v1031, %v1049
      %v1058 = vadd.f32 %v1032, %v1050
      %v1059 = vadd.f32 %v1033, %v1051
      %v1060 = vadd.f32 %v1034, %v1052
      %v1061 = vadd.f32 %v1035, %v1053
      %v1062 = vld [vmem:[%s7 + $0x2] sm:$0x1]
      %v1063 = vld [vmem:[#allocation3 + $0x9] sm:$0xff]
      %v1064 = vld [vmem:[#allocation3 + $0x11] sm:$0xff]
      %v1065 = vld [vmem:[#allocation3 + $0x19] sm:$0xff]
      %v1066 = vld [vmem:[#allocation3 + $0x21] sm:$0xff]
      %v1067 = vld [vmem:[#allocation3 + $0x29] sm:$0xff]
      %v1068 = vld [vmem:[#allocation3 + $0x31] sm:$0xff]
      %v1069 = vld [vmem:[#allocation3 + $0x39] sm:$0xff]
      %v1070 = vld [vmem:[#allocation3 + $0x41] sm:$0xff]
      %v1071 = vsel %vm679, %v1063, 0.0
      %v1072 = vsel %vm680, %v1064, 0.0
      %v1073 = vsel %vm681, %v1065, 0.0
      %v1074 = vsel %vm682, %v1066, 0.0
      %v1075 = vsel %vm683, %v1067, 0.0
      %v1076 = vsel %vm684, %v1068, 0.0
      %v1077 = vsel %vm685, %v1069, 0.0
      %v1078 = vsel %vm686, %v1070, 0.0
      %v1079 = vperm.slane %v1062, 0
      %v1080 = vmul.f32 %v1071, %v1079
      %v1081 = vmul.f32 %v1072, %v1079
      %v1082 = vmul.f32 %v1073, %v1079
      %v1083 = vmul.f32 %v1074, %v1079
      %v1084 = vmul.f32 %v1075, %v1079
      %v1085 = vmul.f32 %v1076, %v1079
      %v1086 = vmul.f32 %v1077, %v1079
      %v1087 = vmul.f32 %v1078, %v1079
      %v1088 = vadd.f32 %v1054, %v1080
      %v1089 = vadd.f32 %v1055, %v1081
      %v1090 = vadd.f32 %v1056, %v1082
      %v1091 = vadd.f32 %v1057, %v1083
      %v1092 = vadd.f32 %v1058, %v1084
      %v1093 = vadd.f32 %v1059, %v1085
      %v1094 = vadd.f32 %v1060, %v1086
      %v1095 = vadd.f32 %v1061, %v1087
      %v1096 = vld [vmem:[%s7 + $0x3] sm:$0x1]
      %v1097 = vld [vmem:[#allocation3 + $0x47] sm:$0xff]
      %v1098 = vsel %vm611, %v1004, 0.0
      %v1099 = vsel %vm612, %v1005, 0.0
      %v1100 = vsel %vm613, %v1006, 0.0
      %v1101 = vsel %vm614, %v1007, 0.0
      %v1102 = vsel %vm615, %v1008, 0.0
      %v1103 = vsel %vm616, %v1009, 0.0
      %v1104 = vsel %vm617, %v1010, 0.0
      %v1105 = vsel %vm618, %v1097, 0.0
      %v1106 = vperm.slane %v1096, 0
      %v1107 = vmul.f32 %v1098, %v1106
      %v1108 = vmul.f32 %v1099, %v1106
      %v1109 = vmul.f32 %v1100, %v1106
      %v1110 = vmul.f32 %v1101, %v1106
      %v1111 = vmul.f32 %v1102, %v1106
      %v1112 = vmul.f32 %v1103, %v1106
      %v1113 = vmul.f32 %v1104, %v1106
      %v1114 = vmul.f32 %v1105, %v1106
      %v1115 = vadd.f32 %v1088, %v1107
      %v1116 = vadd.f32 %v1089, %v1108
      %v1117 = vadd.f32 %v1090, %v1109
      %v1118 = vadd.f32 %v1091, %v1110
      %v1119 = vadd.f32 %v1092, %v1111
      %v1120 = vadd.f32 %v1093, %v1112
      %v1121 = vadd.f32 %v1094, %v1113
      %v1122 = vadd.f32 %v1095, %v1114
      %v1123 = vld [vmem:[%s7 + $0x4] sm:$0x1]
      %v1124 = vld [vmem:[#allocation3 + $0x48] sm:$0xff]
      %v1125 = vperm.slane %v1123, 0
      %v1126 = vmul.f32 %v1038, %v1125
      %v1127 = vmul.f32 %v1039, %v1125
      %v1128 = vmul.f32 %v1040, %v1125
      %v1129 = vmul.f32 %v1041, %v1125
      %v1130 = vmul.f32 %v1042, %v1125
      %v1131 = vmul.f32 %v1043, %v1125
      %v1132 = vmul.f32 %v1044, %v1125
      %v1133 = vmul.f32 %v1124, %v1125
      %v1134 = vadd.f32 %v1115, %v1126
      %v1135 = vadd.f32 %v1116, %v1127
      %v1136 = vadd.f32 %v1117, %v1128
      %v1137 = vadd.f32 %v1118, %v1129
      %v1138 = vadd.f32 %v1119, %v1130
      %v1139 = vadd.f32 %v1120, %v1131
      %v1140 = vadd.f32 %v1121, %v1132
      %v1141 = vadd.f32 %v1122, %v1133
      %v1142 = vld [vmem:[%s7 + $0x5] sm:$0x1]
      %v1143 = vld [vmem:[#allocation3 + $0x49] sm:$0xff]
      %v1144 = vsel %vm679, %v1064, 0.0
      %v1145 = vsel %vm680, %v1065, 0.0
      %v1146 = vsel %vm681, %v1066, 0.0
      %v1147 = vsel %vm682, %v1067, 0.0
      %v1148 = vsel %vm683, %v1068, 0.0
      %v1149 = vsel %vm684, %v1069, 0.0
      %v1150 = vsel %vm685, %v1070, 0.0
      %v1151 = vsel %vm686, %v1143, 0.0
      %v1152 = vperm.slane %v1142, 0
      %v1153 = vmul.f32 %v1144, %v1152
      %v1154 = vmul.f32 %v1145, %v1152
      %v1155 = vmul.f32 %v1146, %v1152
      %v1156 = vmul.f32 %v1147, %v1152
      %v1157 = vmul.f32 %v1148, %v1152
      %v1158 = vmul.f32 %v1149, %v1152
      %v1159 = vmul.f32 %v1150, %v1152
      %v1160 = vmul.f32 %v1151, %v1152
      %v1161 = vadd.f32 %v1134, %v1153
      %v1162 = vadd.f32 %v1135, %v1154
      %v1163 = vadd.f32 %v1136, %v1155
      %v1164 = vadd.f32 %v1137, %v1156
      %v1165 = vadd.f32 %v1138, %v1157
      %v1166 = vadd.f32 %v1139, %v1158
      %v1167 = vadd.f32 %v1140, %v1159
      %v1168 = vadd.f32 %v1141, %v1160
      %v1169 = vld [vmem:[%s7 + $0x6] sm:$0x1]
      %v1170 = vld [vmem:[#allocation3 + $0x4f] sm:$0xff]
      %v1171 = vsel %vm611, %v1005, 0.0
      %v1172 = vsel %vm612, %v1006, 0.0
      %v1173 = vsel %vm613, %v1007, 0.0
      %v1174 = vsel %vm614, %v1008, 0.0
      %v1175 = vsel %vm615, %v1009, 0.0
      %v1176 = vsel %vm616, %v1010, 0.0
      %v1177 = vsel %vm617, %v1097, 0.0
      %v1178 = vsel %vm618, %v1170, 0.0
      %v1179 = vperm.slane %v1169, 0
      %v1180 = vmul.f32 %v1171, %v1179
      %v1181 = vmul.f32 %v1172, %v1179
      %v1182 = vmul.f32 %v1173, %v1179
      %v1183 = vmul.f32 %v1174, %v1179
      %v1184 = vmul.f32 %v1175, %v1179
      %v1185 = vmul.f32 %v1176, %v1179
      %v1186 = vmul.f32 %v1177, %v1179
      %v1187 = vmul.f32 %v1178, %v1179
      %v1188 = vadd.f32 %v1161, %v1180
      %v1189 = vadd.f32 %v1162, %v1181
      %v1190 = vadd.f32 %v1163, %v1182
      %v1191 = vadd.f32 %v1164, %v1183
      %v1192 = vadd.f32 %v1165, %v1184
      %v1193 = vadd.f32 %v1166, %v1185
      %v1194 = vadd.f32 %v1167, %v1186
      %v1195 = vadd.f32 %v1168, %v1187
      %v1196 = vld [vmem:[%s7 + $0x7] sm:$0x1]
      %v1197 = vld [vmem:[#allocation3 + $0x50] sm:$0xff]
      %v1198 = vperm.slane %v1196, 0
      %v1199 = vmul.f32 %v1039, %v1198
      %v1200 = vmul.f32 %v1040, %v1198
      %v1201 = vmul.f32 %v1041, %v1198
      %v1202 = vmul.f32 %v1042, %v1198
      %v1203 = vmul.f32 %v1043, %v1198
      %v1204 = vmul.f32 %v1044, %v1198
      %v1205 = vmul.f32 %v1124, %v1198
      %v1206 = vmul.f32 %v1197, %v1198
      %v1207 = vadd.f32 %v1188, %v1199
      %v1208 = vadd.f32 %v1189, %v1200
      %v1209 = vadd.f32 %v1190, %v1201
      %v1210 = vadd.f32 %v1191, %v1202
      %v1211 = vadd.f32 %v1192, %v1203
      %v1212 = vadd.f32 %v1193, %v1204
      %v1213 = vadd.f32 %v1194, %v1205
      %v1214 = vadd.f32 %v1195, %v1206
      %v1215 = vld [vmem:[%s7 + $0x8] sm:$0x1]
      %v1216 = vld [vmem:[#allocation3 + $0x51] sm:$0xff]
      %v1217 = vsel %vm679, %v1065, 0.0
      %v1218 = vsel %vm680, %v1066, 0.0
      %v1219 = vsel %vm681, %v1067, 0.0
      %v1220 = vsel %vm682, %v1068, 0.0
      %v1221 = vsel %vm683, %v1069, 0.0
      %v1222 = vsel %vm684, %v1070, 0.0
      %v1223 = vsel %vm685, %v1143, 0.0
      %v1224 = vsel %vm686, %v1216, 0.0
      %v1225 = vperm.slane %v1215, 0
      %v1226 = vmul.f32 %v1217, %v1225
      %v1227 = vmul.f32 %v1218, %v1225
      %v1228 = vmul.f32 %v1219, %v1225
      %v1229 = vmul.f32 %v1220, %v1225
      %v1230 = vmul.f32 %v1221, %v1225
      %v1231 = vmul.f32 %v1222, %v1225
      %v1232 = vmul.f32 %v1223, %v1225
      %v1233 = vmul.f32 %v1224, %v1225
      %v1234 = vadd.f32 %v1207, %v1226
      %v1235 = vadd.f32 %v1208, %v1227
      %v1236 = vadd.f32 %v1209, %v1228
      %v1237 = vadd.f32 %v1210, %v1229
      %v1238 = vadd.f32 %v1211, %v1230
      %v1239 = vadd.f32 %v1212, %v1231
      %v1240 = vadd.f32 %v1213, %v1232
      %v1241 = vadd.f32 %v1214, %v1233
      %v1242 = vld [vmem:[%s8] sm:$0x1]
      %v1244 = vperm.slane %v1242, 0
      %v1246 = vmul.f32 %v1234, %v1244
      %v1247 = vmul.f32 %v1235, %v1244
      %v1248 = vmul.f32 %v1236, %v1244
      %v1249 = vmul.f32 %v1237, %v1244
      %v1250 = vmul.f32 %v1238, %v1244
      %v1251 = vmul.f32 %v1239, %v1244
      %v1252 = vmul.f32 %v1240, %v1244
      %v1253 = vmul.f32 %v1241, %v1244
      %v1254 = vld [vmem:[%s9] sm:$0x1]
      %v1256 = vperm.slane %v1254, 0
      %v1258 = vadd.f32 %v1246, %v1256
      %v1259 = vadd.f32 %v1247, %v1256
      %v1260 = vadd.f32 %v1248, %v1256
      %v1261 = vadd.f32 %v1249, %v1256
      %v1262 = vadd.f32 %v1250, %v1256
      %v1263 = vadd.f32 %v1251, %v1256
      %v1264 = vadd.f32 %v1252, %v1256
      %v1265 = vadd.f32 %v1253, %v1256
      %v1266 = vld [vmem:[%s10] sm:$0xff]
      %v1267 = vld [vmem:[%s10 + $0x8] sm:$0xff]
      %v1268 = vld [vmem:[%s11] sm:$0xf]
      %v1270 = vsel %vm981, %v1258, 0
      %v1273 = vsel %vm981, %v1259, 0
      %v1276 = vsel %vm981, %v1260, 0
      %v1279 = vsel %vm981, %v1261, 0
      %v1282 = vsel %vm981, %v1262, 0
      %v1285 = vsel %vm981, %v1263, 0
      %v1288 = vsel %vm981, %v1264, 0
      %v1291 = vsel %vm981, %v1265, 0
      %vm1293 = vcmask 1043456
      %v1295 = vsel %vm1293, %v1268, 0
      %1297 = vmatpush.msra.mxu0 0.0
      %1298 = vmatpush.msra.mxu0 0.0
      %1299 = vmatpush.msra.mxu0 0.0
      %1300 = vmatpush.msra.mxu0 0.0
      %1301 = vmatpush.msra.mxu0 0.0
      %1302 = vmatpush.msra.mxu0 0.0
      %1303 = vmatpush.msra.mxu0 0.0
      %1304 = vmatpush.msra.mxu0 0.0
      %1305 = vmatpush.msra.mxu0 0.0
      %1306 = vmatpush.msra.mxu0 0.0
      %1307 = vmatpush.msra.mxu0 0.0
      %1308 = vmatpush.msra.mxu0 0.0
      %1309 = vmatpush.msra.mxu0 0.0
      %1310 = vmatpush.msra.mxu0 0.0
      %1311 = vmatpush.msra.mxu0 0.0
      %1312 = vmatpush.msra.mxu0 %v1295
      %1313 = vmatmul.f32.gmra.mxu0 %v1270
      %v1314 = vpop.f32.mrf.mxu0
      %v1315 = vadd.f32 0.0, %v1314
      %1316 = vmatmul.f32.gmra.mxu0 %v1273
      %v1317 = vpop.f32.mrf.mxu0
      %v1318 = vadd.f32 0.0, %v1317
      %1319 = vmatmul.f32.gmra.mxu0 %v1276
      %v1320 = vpop.f32.mrf.mxu0
      %v1321 = vadd.f32 0.0, %v1320
      %1322 = vmatmul.f32.gmra.mxu0 %v1279
      %v1323 = vpop.f32.mrf.mxu0
      %v1324 = vadd.f32 0.0, %v1323
      %1325 = vmatmul.f32.gmra.mxu0 %v1282
      %v1326 = vpop.f32.mrf.mxu0
      %v1327 = vadd.f32 0.0, %v1326
      %1328 = vmatmul.f32.gmra.mxu0 %v1285
      %v1329 = vpop.f32.mrf.mxu0
      %v1330 = vadd.f32 0.0, %v1329
      %1331 = vmatmul.f32.gmra.mxu0 %v1288
      %v1332 = vpop.f32.mrf.mxu0
      %v1333 = vadd.f32 0.0, %v1332
      %1334 = vmatmul.f32.gmra.mxu0 %v1291
      %v1335 = vpop.f32.mrf.mxu0
      %v1336 = vadd.f32 0.0, %v1335
      %1337 = vdwg.mxu0
      %v1339 = vsel %vm476, %v874, 0
      %v1342 = vsel %vm476, %v875, 0
      %v1345 = vsel %vm476, %v876, 0
      %v1348 = vsel %vm476, %v877, 0
      %v1351 = vsel %vm476, %v878, 0
      %v1354 = vsel %vm476, %v879, 0
      %v1357 = vsel %vm476, %v880, 0
      %v1360 = vsel %vm476, %v881, 0
      %1362 = vmatpush.msra.mxu0 0.0
      %1363 = vmatpush.msra.mxu0 0.0
      %1364 = vmatpush.msra.mxu0 0.0
      %1365 = vmatpush.msra.mxu0 0.0
      %1366 = vmatpush.msra.mxu0 0.0
      %1367 = vmatpush.msra.mxu0 0.0
      %1368 = vmatpush.msra.mxu0 0.0
      %1369 = vmatpush.msra.mxu0 0.0
      %1370 = vmatpush.msra.mxu0 0.0
      %1371 = vmatpush.msra.mxu0 0.0
      %1372 = vmatpush.msra.mxu0 0.0
      %1373 = vmatpush.msra.mxu0 0.0
      %1374 = vmatpush.msra.mxu0 0.0
      %1375 = vmatpush.msra.mxu0 0.0
      %1376 = vmatpush.msra.mxu0 %v1267
      %1377 = vmatpush.msra.mxu0 %v1266
      %1378 = vmatmul.f32.gmra.mxu0 %v1339
      %v1379 = vpop.f32.mrf.mxu0
      %v1380 = vadd.f32 %v1315, %v1379
      %1381 = vmatmul.f32.gmra.mxu0 %v1342
      %v1382 = vpop.f32.mrf.mxu0
      %v1383 = vadd.f32 %v1318, %v1382
      %1384 = vmatmul.f32.gmra.mxu0 %v1345
      %v1385 = vpop.f32.mrf.mxu0
      %v1386 = vadd.f32 %v1321, %v1385
      %1387 = vmatmul.f32.gmra.mxu0 %v1348
      %v1388 = vpop.f32.mrf.mxu0
      %v1389 = vadd.f32 %v1324, %v1388
      %1390 = vmatmul.f32.gmra.mxu0 %v1351
      %v1391 = vpop.f32.mrf.mxu0
      %v1392 = vadd.f32 %v1327, %v1391
      %1393 = vmatmul.f32.gmra.mxu0 %v1354
      %v1394 = vpop.f32.mrf.mxu0
      %v1395 = vadd.f32 %v1330, %v1394
      %1396 = vmatmul.f32.gmra.mxu0 %v1357
      %v1397 = vpop.f32.mrf.mxu0
      %v1398 = vadd.f32 %v1333, %v1397
      %1399 = vmatmul.f32.gmra.mxu0 %v1360
      %v1400 = vpop.f32.mrf.mxu0
      %v1401 = vadd.f32 %v1336, %v1400
      %1402 = vdwg.mxu0
      %v1403 = vld [vmem:[%s12] sm:$0x1]
      %v1405 = vperm.slane %v1403, 0
      %v1407 = vmul.f32 %v1380, %v1405
      %v1408 = vmul.f32 %v1383, %v1405
      %v1409 = vmul.f32 %v1386, %v1405
      %v1410 = vmul.f32 %v1389, %v1405
      %v1411 = vmul.f32 %v1392, %v1405
      %v1412 = vmul.f32 %v1395, %v1405
      %v1413 = vmul.f32 %v1398, %v1405
      %v1414 = vmul.f32 %v1401, %v1405
      %v1415 = vld [vmem:[%s13] sm:$0x1]
      %v1417 = vperm.slane %v1415, 0
      %v1419 = vadd.f32 %v1407, %v1417
      %v1420 = vadd.f32 %v1408, %v1417
      %v1421 = vadd.f32 %v1409, %v1417
      %v1422 = vadd.f32 %v1410, %v1417
      %v1423 = vadd.f32 %v1411, %v1417
      %v1424 = vadd.f32 %v1412, %v1417
      %v1425 = vadd.f32 %v1413, %v1417
      %v1426 = vadd.f32 %v1414, %v1417
      %v1427 = vmax.f32 %v1419, 0.0
      %v1428 = vmax.f32 %v1420, 0.0
      %v1429 = vmax.f32 %v1421, 0.0
      %v1430 = vmax.f32 %v1422, 0.0
      %v1431 = vmax.f32 %v1423, 0.0
      %v1432 = vmax.f32 %v1424, 0.0
      %v1433 = vmax.f32 %v1425, 0.0
      %v1434 = vmax.f32 %v1426, 0.0
      %vm1435 = vcmask 64512
      %1436 = vst.msk [vmem:[%s467] sm:$0xff] %vm1435, %v1427
      %1437 = vst.msk [vmem:[%s467 + $0x8] sm:$0xff] %vm1435, %v1428
      %1438 = vst.msk [vmem:[%s467 + $0x10] sm:$0xff] %vm1435, %v1429
      %1439 = vst.msk [vmem:[%s467 + $0x18] sm:$0xff] %vm1435, %v1430
      %1440 = vst.msk [vmem:[%s467 + $0x20] sm:$0xff] %vm1435, %v1431
      %1441 = vst.msk [vmem:[%s467 + $0x28] sm:$0xff] %vm1435, %v1432
      %1442 = vst.msk [vmem:[%s467 + $0x30] sm:$0xff] %vm1435, %v1433
      %1443 = vst.msk [vmem:[%s467 + $0x38] sm:$0xff] %vm1435, %v1434
      %p1444 = scmp.lt.s32.totalorder %s25, 1
      %s1445 = scalar_select %p1444, %s25, 1
      %s1446 = smul.addr %s1445, 8
      %s1447 = smul.addr %s1446, 8
      %s1448 = scalar_lea.vmem %s14, %s1447
      // Predicated region
      $region77: #{tpu_custom_call.1} parent=75 // pred_check
        %p1449 = pneg %p342
      $region78: #{tpu_custom_call.1} parent=75 // pred_check_branch
        %1451 = sbr.rel (%p1449) target = $region80
      $region79: #{tpu_custom_call.1} parent=75 // pred_region
        _
      $region80: #{tpu_custom_call.1} parent=75 // pred_fallthru
        _
    $region76: #{tpu_custom_call.1} parent=5 // pred_fallthru
      _
    %p1452 = scmp.le.s32.totalorder 2, %s20
    // Predicated region
    $region81: #{tpu_custom_call.1} parent=5 // pred_check
      %p1453 = pneg %p1452
    $region82: #{tpu_custom_call.1} parent=5 // pred_check_branch
      %1455 = sbr.rel (%p1453) target = $region84
    $region83: #{tpu_custom_call.1} parent=5 // pred_region
      %s1456 = ssub.s32 %s20, 2
      // Predicated region
      $region85: #{tpu_custom_call.1} parent=83 // pred_check
        %p1457 = pneg %p348
      $region86: #{tpu_custom_call.1} parent=83 // pred_check_branch
        %1459 = sbr.rel (%p1457) target = $region88
      $region87: #{tpu_custom_call.1} parent=83 // pred_region
        %p1460 = scmp.lt.s32.totalorder %s26, 1
        %s1461 = scalar_select %p1460, %s26, 1
        %s1462 = smul.addr %s1461, 8
        %s1463 = smul.addr %s1462, 8
        %s1464 = scalar_lea.vmem %s14, %s1463
      $region88: #{tpu_custom_call.1} parent=83 // pred_fallthru
        _
    $region84: #{tpu_custom_call.1} parent=5 // pred_fallthru
      _
  $region6: #{tpu_custom_call.1} parent=0 // loop_footer
    %s24 = sadd.s32 1, %s20
  $region7: #{tpu_custom_call.1} parent=0 // loop_footer_branch
    %19 = sbr.rel target = $region3
  $region8: #{tpu_custom_call.1} parent=0 // loop_exit
    _

</llo_original>
